<compile_context>
chip_gen: v7x
topology: tpu7x:2x2x1
jax: 0.10.0
libtpu: 0.0.40
codegen_flags: <defaults>
</compile_context>

<pallas_src>
import math
import functools

import jax
import jax.numpy as jnp
import numpy as np
from jax.experimental import pallas as pl
from jax.experimental.pallas import tpu as pltpu


# --------------------------------------------------------------------------
# Fused Pallas kernel: one grid step == one LSTM layer of one stacked module.
#   grid = (num_iter, num_lstms, num_layers)   -- all sequential ("arbitrary")
# The sequence (o_ref) and running per-layer states (hn_ref / cn_ref) are
# resident output blocks that carry state between grid steps.
# --------------------------------------------------------------------------
def _fused_lstm_kernel(x_ref, wih_ref, whh_ref, b_ref, h0_ref, c0_ref,
                       o_ref, hn_ref, cn_ref):
    # Shapes (static at trace time):
    #   x_ref, o_ref : (T*B, H)   resident across the whole grid
    #   wih_ref      : (H, 4H)    this layer's W_ih^T  (streamed per grid step)
    #   whh_ref      : (H, 4H)    this layer's W_hh^T  (streamed per grid step)
    #   b_ref        : (1, 4H)    this layer's fused bias (b_ih + b_hh)
    #   h0/c0_ref    : (L, B, H)  initial states (resident)
    #   hn/cn_ref    : (L, B, H)  per-layer running final states (resident)
    m = pl.program_id(1)          # which LSTM module in the chain
    l = pl.program_id(2)          # which layer inside the module
    L, B, H = h0_ref.shape
    TB = x_ref.shape[0]
    T = TB // B

    # Layer input sequence: X for the very first layer of an iteration,
    # otherwise the previous layer's output (resident in o_ref).
    is_first_layer = jnp.logical_and(m == 0, l == 0)
    x_in = jnp.where(is_first_layer, x_ref[...], o_ref[...])       # (T*B, H)

    # Initial state: h0/c0 for the first module of an iteration, otherwise the
    # previous module's final state for this layer (still intact in hn/cn,
    # since the current module has only overwritten indices < l so far).
    use_init = m == 0
    h = jnp.where(use_init, h0_ref[l], hn_ref[l])                   # (B, H)
    c = jnp.where(use_init, c0_ref[l], cn_ref[l])                   # (B, H)

    # Hoisted (non-recurrent) input projection: one matmul for all T steps.
    xg = jnp.dot(x_in, wih_ref[...],
                 preferred_element_type=jnp.float32) + b_ref[...]   # (T*B, 4H)

    whh = whh_ref[...]                                              # (H, 4H)
    ys = []
    for t in range(T):   # static unroll: only the recurrent part is per-step
        gates = xg[t * B:(t + 1) * B, :] + jnp.dot(
            h, whh, preferred_element_type=jnp.float32)             # (B, 4H)
        i_g = jax.nn.sigmoid(gates[:, 0 * H:1 * H])
        f_g = jax.nn.sigmoid(gates[:, 1 * H:2 * H])
        g_g = jnp.tanh(gates[:, 2 * H:3 * H])
        o_g = jax.nn.sigmoid(gates[:, 3 * H:4 * H])
        c = f_g * c + i_g * g_g
        h = o_g * jnp.tanh(c)
        ys.append(h)

    # Single lane-dense store of the whole layer output (next layer's input).
    o_ref[...] = jnp.concatenate(ys, axis=0).astype(o_ref.dtype)
    hn_ref[l] = h.astype(hn_ref.dtype)
    cn_ref[l] = c.astype(cn_ref.dtype)


@functools.partial(jax.jit, static_argnames=("num_iter",))
def fused_lstm_forward(x2d, w_ih_t, w_hh_t, b, h0, c0, *, num_iter):
    """Run the full BasicLSTM forward in one pallas_call.

    x2d    : (T*B, H)        pre-scaled, sequence-major flattened input
    w_ih_t : (M, L, H, 4H)   pre-transposed input weights
    w_hh_t : (M, L, H, 4H)   pre-transposed recurrent weights
    b      : (M, L, 1, 4H)   fused biases (b_ih + b_hh)
    h0, c0 : (L, B, H)
    returns (o2d: (T*B, H), hn: (L, B, H), cn: (L, B, H))
    """
    M, L, H, H4 = w_ih_t.shape
    TB = x2d.shape[0]
    B = h0.shape[1]

    grid_spec = pltpu.PrefetchScalarGridSpec(
        num_scalar_prefetch=0,
        grid=(num_iter, M, L),
        in_specs=[
            pl.BlockSpec((TB, H), lambda it, m, l: (0, 0)),            # X (resident)
            pl.BlockSpec((None, None, H, H4),
                         lambda it, m, l: (m, l, 0, 0)),               # W_ih^T per layer
            pl.BlockSpec((None, None, H, H4),
                         lambda it, m, l: (m, l, 0, 0)),               # W_hh^T per layer
            pl.BlockSpec((None, None, 1, H4),
                         lambda it, m, l: (m, l, 0, 0)),               # bias per layer
            pl.BlockSpec((L, B, H), lambda it, m, l: (0, 0, 0)),       # h0 (resident)
            pl.BlockSpec((L, B, H), lambda it, m, l: (0, 0, 0)),       # c0 (resident)
        ],
        out_specs=[
            pl.BlockSpec((TB, H), lambda it, m, l: (0, 0)),            # o  (carry)
            pl.BlockSpec((L, B, H), lambda it, m, l: (0, 0, 0)),       # hn (carry)
            pl.BlockSpec((L, B, H), lambda it, m, l: (0, 0, 0)),       # cn (carry)
        ],
    )

    o2d, hn, cn = pl.pallas_call(
        _fused_lstm_kernel,
        out_shape=(jax.ShapeDtypeStruct((TB, H), x2d.dtype),
                   jax.ShapeDtypeStruct((L, B, H), x2d.dtype),
                   jax.ShapeDtypeStruct((L, B, H), x2d.dtype)),
        grid_spec=grid_spec,
        compiler_params=pltpu.CompilerParams(
            dimension_semantics=("arbitrary", "arbitrary", "arbitrary")),
    )(x2d, w_ih_t, w_hh_t, b, h0, c0)
    return o2d, hn, cn


# --------------------------------------------------------------------------
# BasicLSTM module (matches the PyTorch forward semantics, eval mode)
# --------------------------------------------------------------------------
class BasicLSTMPallas:
    def __init__(self, sz=128, zoom=1, num_layers=4, num_lstms=8, num_iter=3,
                 key=None):
        self.sz = sz
        self.zoom = zoom
        self.num_layers = num_layers
        self.num_lstms = num_lstms
        self.num_iter = num_iter
        if key is None:
            key = jax.random.PRNGKey(0)
        bound = 1.0 / math.sqrt(sz)
        k1, k2, k3, k4 = jax.random.split(key, 4)
        shape_w = (num_lstms, num_layers, 4 * sz, sz)   # input_size == hidden
        shape_b = (num_lstms, num_layers, 4 * sz)
        w_ih = jax.random.uniform(k1, shape_w, jnp.float32, -bound, bound)
        w_hh = jax.random.uniform(k2, shape_w, jnp.float32, -bound, bound)
        b_ih = jax.random.uniform(k3, shape_b, jnp.float32, -bound, bound)
        b_hh = jax.random.uniform(k4, shape_b, jnp.float32, -bound, bound)
        # Pre-transpose / pre-fuse ONCE (not per forward call).
        self.w_ih_t = jnp.swapaxes(w_ih, -1, -2)          # (M, L, sz, 4sz)
        self.w_hh_t = jnp.swapaxes(w_hh, -1, -2)          # (M, L, sz, 4sz)
        self.b = (b_ih + b_hh)[:, :, None, :]             # (M, L, 1, 4sz)

    # ---- Pallas forward --------------------------------------------------
    def forward(self, X, h0, c0):
        T, B, _ = X.shape
        x2d = (self.zoom * X).reshape(T * B, self.sz)
        o2d, hn, cn = fused_lstm_forward(x2d, self.w_ih_t, self.w_hh_t,
                                         self.b, h0, c0,
                                         num_iter=self.num_iter)
        return o2d.reshape(T, B, self.sz), (hn, cn)

    # ---- pure-JAX reference (mirrors the PyTorch forward loops) -----------
    def forward_reference(self, X, h0, c0):
        def layer(seq, wih_t, whh_t, bias, h_init, c_init):
            def step(carry, xt):
                h, c = carry
                g = xt @ wih_t + h @ whh_t + bias
                i_g, f_g, g_g, o_g = jnp.split(g, 4, axis=-1)
                c = jax.nn.sigmoid(f_g) * c + jax.nn.sigmoid(i_g) * jnp.tanh(g_g)
                h = jax.nn.sigmoid(o_g) * jnp.tanh(c)
                return (h, c), h
            (hT, cT), ys = jax.lax.scan(step, (h_init, c_init), seq)
            return ys, hT, cT

        x0 = self.zoom * X
        o = hn = cn = None
        for _ in range(self.num_iter):
            seq, h_prev, c_prev = x0, h0, c0
            for m in range(self.num_lstms):
                h_out, c_out = [], []
                for l in range(self.num_layers):
                    seq, hT, cT = layer(seq, self.w_ih_t[m, l],
                                        self.w_hh_t[m, l], self.b[m, l],
                                        h_prev[l], c_prev[l])
                    h_out.append(hT)
                    c_out.append(cT)
                h_prev = jnp.stack(h_out, 0)
                c_prev = jnp.stack(c_out, 0)
            o, hn, cn = seq, h_prev, c_prev
        return o, (hn, cn)


# --------------------------------------------------------------------------
if __name__ == "__main__":
    SZ = 128
    NUM_LAYERS = 4
    NUM_LSTMS = 8
    NUM_ITER = 3
    SEQ = 8
    BATCH = 2

    root = jax.random.PRNGKey(0)
    k_param, k_x, k_h, k_c = jax.random.split(root, 4)

    model = BasicLSTMPallas(sz=SZ, zoom=1, num_layers=NUM_LAYERS,
                            num_lstms=NUM_LSTMS, num_iter=NUM_ITER,
                            key=k_param)

    X = jax.random.normal(k_x, (SEQ, BATCH, SZ), jnp.float32)
    h0 = jax.random.normal(k_h, (NUM_LAYERS, BATCH, SZ), jnp.float32)
    c0 = jax.random.normal(k_c, (NUM_LAYERS, BATCH, SZ), jnp.float32)

    # Pallas forward (single fused pallas_call)
    o, (hn, cn) = model.forward(X, h0, c0)
    o, hn, cn = jax.block_until_ready((o, hn, cn))

    # Pure-JAX reference check
    o_r, (hn_r, cn_r) = model.forward_reference(X, h0, c0)
    o_r, hn_r, cn_r = jax.block_until_ready((o_r, hn_r, cn_r))

    max_diff = max(float(jnp.max(jnp.abs(o - o_r))),
                   float(jnp.max(jnp.abs(hn - hn_r))),
                   float(jnp.max(jnp.abs(cn - cn_r))))
    if not np.isfinite(max_diff) or max_diff > 5e-3:
        raise AssertionError(f"Pallas/reference mismatch: max_diff={max_diff}")

    print("KERNEL_OK")
</pallas_src>

<mosaic_0001>
module attributes {stable_mosaic.version = 11 : i64} {
  func.func @_fused_lstm_kernel(%arg0: i32, %arg1: i32, %arg2: i32, %arg3: memref<16x128xf32, #tpu.memory_space<vmem>>, %arg4: memref<1x1x128x512xf32, #tpu.memory_space<vmem>>, %arg5: memref<1x1x128x512xf32, #tpu.memory_space<vmem>>, %arg6: memref<1x1x1x512xf32, #tpu.memory_space<vmem>>, %arg7: memref<4x2x128xf32, #tpu.memory_space<vmem>>, %arg8: memref<4x2x128xf32, #tpu.memory_space<vmem>>, %arg9: memref<16x128xf32, #tpu.memory_space<vmem>>, %arg10: memref<4x2x128xf32, #tpu.memory_space<vmem>>, %arg11: memref<4x2x128xf32, #tpu.memory_space<vmem>>) attributes {dimension_semantics = [#tpu.dimension_semantics<arbitrary>, #tpu.dimension_semantics<arbitrary>, #tpu.dimension_semantics<arbitrary>], iteration_bounds = array<i64: 3, 8, 4>, scalar_prefetch = 0 : i64, scratch_operands = 0 : i64, tpu.core_type = #tpu.core_type<tc>, window_params = [{pipeline_mode = #tpu.pipeline_mode<synchronous>, transform_indices = @transform_0, window_bounds = array<i64: 16, 128>}, {transform_indices = @transform_1, window_bounds = array<i64: 1, 1, 128, 512>}, {transform_indices = @transform_2, window_bounds = array<i64: 1, 1, 128, 512>}, {transform_indices = @transform_3, window_bounds = array<i64: 1, 1, 1, 512>}, {pipeline_mode = #tpu.pipeline_mode<synchronous>, transform_indices = @transform_4, window_bounds = array<i64: 4, 2, 128>}, {pipeline_mode = #tpu.pipeline_mode<synchronous>, transform_indices = @transform_5, window_bounds = array<i64: 4, 2, 128>}, {pipeline_mode = #tpu.pipeline_mode<synchronous>, transform_indices = @transform_6, window_bounds = array<i64: 16, 128>}, {pipeline_mode = #tpu.pipeline_mode<synchronous>, transform_indices = @transform_7, window_bounds = array<i64: 4, 2, 128>}, {pipeline_mode = #tpu.pipeline_mode<synchronous>, transform_indices = @transform_8, window_bounds = array<i64: 4, 2, 128>}]} {
    %c0_i32 = arith.constant 0 : i32
    %0 = arith.cmpi eq, %arg1, %c0_i32 : i32
    %c0_i32_0 = arith.constant 0 : i32
    %1 = arith.cmpi eq, %arg2, %c0_i32_0 : i32
    %2 = arith.andi %0, %1 : i1
    %c0 = arith.constant 0 : index
    %c0_1 = arith.constant 0 : index
    %3 = vector.load %arg3[%c0, %c0_1] : memref<16x128xf32, #tpu.memory_space<vmem>>, vector<16x128xf32>
    %c0_2 = arith.constant 0 : index
    %c0_3 = arith.constant 0 : index
    %4 = vector.load %arg9[%c0_2, %c0_3] : memref<16x128xf32, #tpu.memory_space<vmem>>, vector<16x128xf32>
    %5 = arith.select %2, %3, %4 : vector<16x128xf32>
    %c0_i32_4 = arith.constant 0 : i32
    %6 = arith.cmpi eq, %arg1, %c0_i32_4 : i32
    %7 = arith.index_cast %arg2 : i32 to index
    %c0_5 = arith.constant 0 : index
    %c0_6 = arith.constant 0 : index
    %8 = vector.load %arg7[%7, %c0_5, %c0_6] : memref<4x2x128xf32, #tpu.memory_space<vmem>>, vector<1x2x128xf32>
    %9 = vector.shape_cast %8 : vector<1x2x128xf32> to vector<2x128xf32>
    %10 = arith.index_cast %arg2 : i32 to index
    %c0_7 = arith.constant 0 : index
    %c0_8 = arith.constant 0 : index
    %11 = vector.load %arg10[%10, %c0_7, %c0_8] : memref<4x2x128xf32, #tpu.memory_space<vmem>>, vector<1x2x128xf32>
    %12 = vector.shape_cast %11 : vector<1x2x128xf32> to vector<2x128xf32>
    %13 = arith.select %6, %9, %12 : vector<2x128xf32>
    %14 = arith.index_cast %arg2 : i32 to index
    %c0_9 = arith.constant 0 : index
    %c0_10 = arith.constant 0 : index
    %15 = vector.load %arg8[%14, %c0_9, %c0_10] : memref<4x2x128xf32, #tpu.memory_space<vmem>>, vector<1x2x128xf32>
    %16 = vector.shape_cast %15 : vector<1x2x128xf32> to vector<2x128xf32>
    %17 = arith.index_cast %arg2 : i32 to index
    %c0_11 = arith.constant 0 : index
    %c0_12 = arith.constant 0 : index
    %18 = vector.load %arg11[%17, %c0_11, %c0_12] : memref<4x2x128xf32, #tpu.memory_space<vmem>>, vector<1x2x128xf32>
    %19 = vector.shape_cast %18 : vector<1x2x128xf32> to vector<2x128xf32>
    %20 = arith.select %6, %16, %19 : vector<2x128xf32>
    %c0_13 = arith.constant 0 : index
    %c0_14 = arith.constant 0 : index
    %c0_15 = arith.constant 0 : index
    %c0_16 = arith.constant 0 : index
    %21 = vector.load %arg4[%c0_13, %c0_14, %c0_15, %c0_16] : memref<1x1x128x512xf32, #tpu.memory_space<vmem>>, vector<1x1x128x512xf32>
    %22 = vector.shape_cast %21 : vector<1x1x128x512xf32> to vector<128x512xf32>
    %cst = arith.constant dense<0.000000e+00> : vector<16x512xf32>
    %23 = tpu.matmul %5, %22, %cst {dimension_numbers = #tpu.dot_dimension_numbers<[1], [0], [0], [1], [0, 0, 1, 1], [], []>} : vector<16x128xf32>, vector<128x512xf32>, vector<16x512xf32> -> vector<16x512xf32>
    %c0_17 = arith.constant 0 : index
    %c0_18 = arith.constant 0 : index
    %c0_19 = arith.constant 0 : index
    %c0_20 = arith.constant 0 : index
    %24 = vector.load %arg6[%c0_17, %c0_18, %c0_19, %c0_20] : memref<1x1x1x512xf32, #tpu.memory_space<vmem>>, vector<1x1x1x512xf32>
    %25 = vector.shape_cast %24 : vector<1x1x1x512xf32> to vector<1x512xf32>
    %26 = vector.broadcast %25 : vector<1x512xf32> to vector<16x512xf32>
    %27 = arith.addf %23, %26 : vector<16x512xf32>
    %c0_21 = arith.constant 0 : index
    %c0_22 = arith.constant 0 : index
    %c0_23 = arith.constant 0 : index
    %c0_24 = arith.constant 0 : index
    %28 = vector.load %arg5[%c0_21, %c0_22, %c0_23, %c0_24] : memref<1x1x128x512xf32, #tpu.memory_space<vmem>>, vector<1x1x128x512xf32>
    %29 = vector.shape_cast %28 : vector<1x1x128x512xf32> to vector<128x512xf32>
    %30 = vector.extract_strided_slice %27 {offsets = [0, 0], sizes = [2, 512], strides = [1, 1]} : vector<16x512xf32> to vector<2x512xf32>
    %cst_25 = arith.constant dense<0.000000e+00> : vector<2x512xf32>
    %31 = tpu.matmul %13, %29, %cst_25 {dimension_numbers = #tpu.dot_dimension_numbers<[1], [0], [0], [1], [0, 0, 1, 1], [], []>} : vector<2x128xf32>, vector<128x512xf32>, vector<2x512xf32> -> vector<2x512xf32>
    %32 = arith.addf %30, %31 : vector<2x512xf32>
    %33 = vector.extract_strided_slice %32 {offsets = [0, 0], sizes = [2, 128], strides = [1, 1]} : vector<2x512xf32> to vector<2x128xf32>
    %34 = arith.negf %33 : vector<2x128xf32>
    %35 = math.exp %34 : vector<2x128xf32>
    %cst_26 = arith.constant 1.000000e+00 : f32
    %36 = vector.broadcast %cst_26 : f32 to vector<2x128xf32>
    %37 = arith.addf %36, %35 : vector<2x128xf32>
    %38 = arith.divf %36, %37 : vector<2x128xf32>
    %39 = vector.extract_strided_slice %32 {offsets = [0, 128], sizes = [2, 128], strides = [1, 1]} : vector<2x512xf32> to vector<2x128xf32>
    %40 = arith.negf %39 : vector<2x128xf32>
    %41 = math.exp %40 : vector<2x128xf32>
    %cst_27 = arith.constant 1.000000e+00 : f32
    %42 = vector.broadcast %cst_27 : f32 to vector<2x128xf32>
    %43 = arith.addf %42, %41 : vector<2x128xf32>
    %44 = arith.divf %42, %43 : vector<2x128xf32>
    %45 = vector.extract_strided_slice %32 {offsets = [0, 256], sizes = [2, 128], strides = [1, 1]} : vector<2x512xf32> to vector<2x128xf32>
    %46 = math.tanh %45 : vector<2x128xf32>
    %47 = vector.extract_strided_slice %32 {offsets = [0, 384], sizes = [2, 128], strides = [1, 1]} : vector<2x512xf32> to vector<2x128xf32>
    %48 = arith.negf %47 : vector<2x128xf32>
    %49 = math.exp %48 : vector<2x128xf32>
    %cst_28 = arith.constant 1.000000e+00 : f32
    %50 = vector.broadcast %cst_28 : f32 to vector<2x128xf32>
    %51 = arith.addf %50, %49 : vector<2x128xf32>
    %52 = arith.divf %50, %51 : vector<2x128xf32>
    %53 = arith.mulf %44, %20 : vector<2x128xf32>
    %54 = arith.mulf %38, %46 : vector<2x128xf32>
    %55 = arith.addf %53, %54 : vector<2x128xf32>
    %56 = math.tanh %55 : vector<2x128xf32>
    %57 = arith.mulf %52, %56 : vector<2x128xf32>
    %58 = vector.extract_strided_slice %27 {offsets = [2, 0], sizes = [2, 512], strides = [1, 1]} : vector<16x512xf32> to vector<2x512xf32>
    %cst_29 = arith.constant dense<0.000000e+00> : vector<2x512xf32>
    %59 = tpu.matmul %57, %29, %cst_29 {dimension_numbers = #tpu.dot_dimension_numbers<[1], [0], [0], [1], [0, 0, 1, 1], [], []>} : vector<2x128xf32>, vector<128x512xf32>, vector<2x512xf32> -> vector<2x512xf32>
    %60 = arith.addf %58, %59 : vector<2x512xf32>
    %61 = vector.extract_strided_slice %60 {offsets = [0, 0], sizes = [2, 128], strides = [1, 1]} : vector<2x512xf32> to vector<2x128xf32>
    %62 = arith.negf %61 : vector<2x128xf32>
    %63 = math.exp %62 : vector<2x128xf32>
    %cst_30 = arith.constant 1.000000e+00 : f32
    %64 = vector.broadcast %cst_30 : f32 to vector<2x128xf32>
    %65 = arith.addf %64, %63 : vector<2x128xf32>
    %66 = arith.divf %64, %65 : vector<2x128xf32>
    %67 = vector.extract_strided_slice %60 {offsets = [0, 128], sizes = [2, 128], strides = [1, 1]} : vector<2x512xf32> to vector<2x128xf32>
    %68 = arith.negf %67 : vector<2x128xf32>
    %69 = math.exp %68 : vector<2x128xf32>
    %cst_31 = arith.constant 1.000000e+00 : f32
    %70 = vector.broadcast %cst_31 : f32 to vector<2x128xf32>
    %71 = arith.addf %70, %69 : vector<2x128xf32>
    %72 = arith.divf %70, %71 : vector<2x128xf32>
    %73 = vector.extract_strided_slice %60 {offsets = [0, 256], sizes = [2, 128], strides = [1, 1]} : vector<2x512xf32> to vector<2x128xf32>
    %74 = math.tanh %73 : vector<2x128xf32>
    %75 = vector.extract_strided_slice %60 {offsets = [0, 384], sizes = [2, 128], strides = [1, 1]} : vector<2x512xf32> to vector<2x128xf32>
    %76 = arith.negf %75 : vector<2x128xf32>
    %77 = math.exp %76 : vector<2x128xf32>
    %cst_32 = arith.constant 1.000000e+00 : f32
    %78 = vector.broadcast %cst_32 : f32 to vector<2x128xf32>
    %79 = arith.addf %78, %77 : vector<2x128xf32>
    %80 = arith.divf %78, %79 : vector<2x128xf32>
    %81 = arith.mulf %72, %55 : vector<2x128xf32>
    %82 = arith.mulf %66, %74 : vector<2x128xf32>
    %83 = arith.addf %81, %82 : vector<2x128xf32>
    %84 = math.tanh %83 : vector<2x128xf32>
    %85 = arith.mulf %80, %84 : vector<2x128xf32>
    %86 = vector.extract_strided_slice %27 {offsets = [4, 0], sizes = [2, 512], strides = [1, 1]} : vector<16x512xf32> to vector<2x512xf32>
    %cst_33 = arith.constant dense<0.000000e+00> : vector<2x512xf32>
    %87 = tpu.matmul %85, %29, %cst_33 {dimension_numbers = #tpu.dot_dimension_numbers<[1], [0], [0], [1], [0, 0, 1, 1], [], []>} : vector<2x128xf32>, vector<128x512xf32>, vector<2x512xf32> -> vector<2x512xf32>
    %88 = arith.addf %86, %87 : vector<2x512xf32>
    %89 = vector.extract_strided_slice %88 {offsets = [0, 0], sizes = [2, 128], strides = [1, 1]} : vector<2x512xf32> to vector<2x128xf32>
    %90 = arith.negf %89 : vector<2x128xf32>
    %91 = math.exp %90 : vector<2x128xf32>
    %cst_34 = arith.constant 1.000000e+00 : f32
    %92 = vector.broadcast %cst_34 : f32 to vector<2x128xf32>
    %93 = arith.addf %92, %91 : vector<2x128xf32>
    %94 = arith.divf %92, %93 : vector<2x128xf32>
    %95 = vector.extract_strided_slice %88 {offsets = [0, 128], sizes = [2, 128], strides = [1, 1]} : vector<2x512xf32> to vector<2x128xf32>
    %96 = arith.negf %95 : vector<2x128xf32>
    %97 = math.exp %96 : vector<2x128xf32>
    %cst_35 = arith.constant 1.000000e+00 : f32
    %98 = vector.broadcast %cst_35 : f32 to vector<2x128xf32>
    %99 = arith.addf %98, %97 : vector<2x128xf32>
    %100 = arith.divf %98, %99 : vector<2x128xf32>
    %101 = vector.extract_strided_slice %88 {offsets = [0, 256], sizes = [2, 128], strides = [1, 1]} : vector<2x512xf32> to vector<2x128xf32>
    %102 = math.tanh %101 : vector<2x128xf32>
    %103 = vector.extract_strided_slice %88 {offsets = [0, 384], sizes = [2, 128], strides = [1, 1]} : vector<2x512xf32> to vector<2x128xf32>
    %104 = arith.negf %103 : vector<2x128xf32>
    %105 = math.exp %104 : vector<2x128xf32>
    %cst_36 = arith.constant 1.000000e+00 : f32
    %106 = vector.broadcast %cst_36 : f32 to vector<2x128xf32>
    %107 = arith.addf %106, %105 : vector<2x128xf32>
    %108 = arith.divf %106, %107 : vector<2x128xf32>
    %109 = arith.mulf %100, %83 : vector<2x128xf32>
    %110 = arith.mulf %94, %102 : vector<2x128xf32>
    %111 = arith.addf %109, %110 : vector<2x128xf32>
    %112 = math.tanh %111 : vector<2x128xf32>
    %113 = arith.mulf %108, %112 : vector<2x128xf32>
    %114 = vector.extract_strided_slice %27 {offsets = [6, 0], sizes = [2, 512], strides = [1, 1]} : vector<16x512xf32> to vector<2x512xf32>
    %cst_37 = arith.constant dense<0.000000e+00> : vector<2x512xf32>
    %115 = tpu.matmul %113, %29, %cst_37 {dimension_numbers = #tpu.dot_dimension_numbers<[1], [0], [0], [1], [0, 0, 1, 1], [], []>} : vector<2x128xf32>, vector<128x512xf32>, vector<2x512xf32> -> vector<2x512xf32>
    %116 = arith.addf %114, %115 : vector<2x512xf32>
    %117 = vector.extract_strided_slice %116 {offsets = [0, 0], sizes = [2, 128], strides = [1, 1]} : vector<2x512xf32> to vector<2x128xf32>
    %118 = arith.negf %117 : vector<2x128xf32>
    %119 = math.exp %118 : vector<2x128xf32>
    %cst_38 = arith.constant 1.000000e+00 : f32
    %120 = vector.broadcast %cst_38 : f32 to vector<2x128xf32>
    %121 = arith.addf %120, %119 : vector<2x128xf32>
    %122 = arith.divf %120, %121 : vector<2x128xf32>
    %123 = vector.extract_strided_slice %116 {offsets = [0, 128], sizes = [2, 128], strides = [1, 1]} : vector<2x512xf32> to vector<2x128xf32>
    %124 = arith.negf %123 : vector<2x128xf32>
    %125 = math.exp %124 : vector<2x128xf32>
    %cst_39 = arith.constant 1.000000e+00 : f32
    %126 = vector.broadcast %cst_39 : f32 to vector<2x128xf32>
    %127 = arith.addf %126, %125 : vector<2x128xf32>
    %128 = arith.divf %126, %127 : vector<2x128xf32>
    %129 = vector.extract_strided_slice %116 {offsets = [0, 256], sizes = [2, 128], strides = [1, 1]} : vector<2x512xf32> to vector<2x128xf32>
    %130 = math.tanh %129 : vector<2x128xf32>
    %131 = vector.extract_strided_slice %116 {offsets = [0, 384], sizes = [2, 128], strides = [1, 1]} : vector<2x512xf32> to vector<2x128xf32>
    %132 = arith.negf %131 : vector<2x128xf32>
    %133 = math.exp %132 : vector<2x128xf32>
    %cst_40 = arith.constant 1.000000e+00 : f32
    %134 = vector.broadcast %cst_40 : f32 to vector<2x128xf32>
    %135 = arith.addf %134, %133 : vector<2x128xf32>
    %136 = arith.divf %134, %135 : vector<2x128xf32>
    %137 = arith.mulf %128, %111 : vector<2x128xf32>
    %138 = arith.mulf %122, %130 : vector<2x128xf32>
    %139 = arith.addf %137, %138 : vector<2x128xf32>
    %140 = math.tanh %139 : vector<2x128xf32>
    %141 = arith.mulf %136, %140 : vector<2x128xf32>
    %142 = vector.extract_strided_slice %27 {offsets = [8, 0], sizes = [2, 512], strides = [1, 1]} : vector<16x512xf32> to vector<2x512xf32>
    %cst_41 = arith.constant dense<0.000000e+00> : vector<2x512xf32>
    %143 = tpu.matmul %141, %29, %cst_41 {dimension_numbers = #tpu.dot_dimension_numbers<[1], [0], [0], [1], [0, 0, 1, 1], [], []>} : vector<2x128xf32>, vector<128x512xf32>, vector<2x512xf32> -> vector<2x512xf32>
    %144 = arith.addf %142, %143 : vector<2x512xf32>
    %145 = vector.extract_strided_slice %144 {offsets = [0, 0], sizes = [2, 128], strides = [1, 1]} : vector<2x512xf32> to vector<2x128xf32>
    %146 = arith.negf %145 : vector<2x128xf32>
    %147 = math.exp %146 : vector<2x128xf32>
    %cst_42 = arith.constant 1.000000e+00 : f32
    %148 = vector.broadcast %cst_42 : f32 to vector<2x128xf32>
    %149 = arith.addf %148, %147 : vector<2x128xf32>
    %150 = arith.divf %148, %149 : vector<2x128xf32>
    %151 = vector.extract_strided_slice %144 {offsets = [0, 128], sizes = [2, 128], strides = [1, 1]} : vector<2x512xf32> to vector<2x128xf32>
    %152 = arith.negf %151 : vector<2x128xf32>
    %153 = math.exp %152 : vector<2x128xf32>
    %cst_43 = arith.constant 1.000000e+00 : f32
    %154 = vector.broadcast %cst_43 : f32 to vector<2x128xf32>
    %155 = arith.addf %154, %153 : vector<2x128xf32>
    %156 = arith.divf %154, %155 : vector<2x128xf32>
    %157 = vector.extract_strided_slice %144 {offsets = [0, 256], sizes = [2, 128], strides = [1, 1]} : vector<2x512xf32> to vector<2x128xf32>
    %158 = math.tanh %157 : vector<2x128xf32>
    %159 = vector.extract_strided_slice %144 {offsets = [0, 384], sizes = [2, 128], strides = [1, 1]} : vector<2x512xf32> to vector<2x128xf32>
    %160 = arith.negf %159 : vector<2x128xf32>
    %161 = math.exp %160 : vector<2x128xf32>
    %cst_44 = arith.constant 1.000000e+00 : f32
    %162 = vector.broadcast %cst_44 : f32 to vector<2x128xf32>
    %163 = arith.addf %162, %161 : vector<2x128xf32>
    %164 = arith.divf %162, %163 : vector<2x128xf32>
    %165 = arith.mulf %156, %139 : vector<2x128xf32>
    %166 = arith.mulf %150, %158 : vector<2x128xf32>
    %167 = arith.addf %165, %166 : vector<2x128xf32>
    %168 = math.tanh %167 : vector<2x128xf32>
    %169 = arith.mulf %164, %168 : vector<2x128xf32>
    %170 = vector.extract_strided_slice %27 {offsets = [10, 0], sizes = [2, 512], strides = [1, 1]} : vector<16x512xf32> to vector<2x512xf32>
    %cst_45 = arith.constant dense<0.000000e+00> : vector<2x512xf32>
    %171 = tpu.matmul %169, %29, %cst_45 {dimension_numbers = #tpu.dot_dimension_numbers<[1], [0], [0], [1], [0, 0, 1, 1], [], []>} : vector<2x128xf32>, vector<128x512xf32>, vector<2x512xf32> -> vector<2x512xf32>
    %172 = arith.addf %170, %171 : vector<2x512xf32>
    %173 = vector.extract_strided_slice %172 {offsets = [0, 0], sizes = [2, 128], strides = [1, 1]} : vector<2x512xf32> to vector<2x128xf32>
    %174 = arith.negf %173 : vector<2x128xf32>
    %175 = math.exp %174 : vector<2x128xf32>
    %cst_46 = arith.constant 1.000000e+00 : f32
    %176 = vector.broadcast %cst_46 : f32 to vector<2x128xf32>
    %177 = arith.addf %176, %175 : vector<2x128xf32>
    %178 = arith.divf %176, %177 : vector<2x128xf32>
    %179 = vector.extract_strided_slice %172 {offsets = [0, 128], sizes = [2, 128], strides = [1, 1]} : vector<2x512xf32> to vector<2x128xf32>
    %180 = arith.negf %179 : vector<2x128xf32>
    %181 = math.exp %180 : vector<2x128xf32>
    %cst_47 = arith.constant 1.000000e+00 : f32
    %182 = vector.broadcast %cst_47 : f32 to vector<2x128xf32>
    %183 = arith.addf %182, %181 : vector<2x128xf32>
    %184 = arith.divf %182, %183 : vector<2x128xf32>
    %185 = vector.extract_strided_slice %172 {offsets = [0, 256], sizes = [2, 128], strides = [1, 1]} : vector<2x512xf32> to vector<2x128xf32>
    %186 = math.tanh %185 : vector<2x128xf32>
    %187 = vector.extract_strided_slice %172 {offsets = [0, 384], sizes = [2, 128], strides = [1, 1]} : vector<2x512xf32> to vector<2x128xf32>
    %188 = arith.negf %187 : vector<2x128xf32>
    %189 = math.exp %188 : vector<2x128xf32>
    %cst_48 = arith.constant 1.000000e+00 : f32
    %190 = vector.broadcast %cst_48 : f32 to vector<2x128xf32>
    %191 = arith.addf %190, %189 : vector<2x128xf32>
    %192 = arith.divf %190, %191 : vector<2x128xf32>
    %193 = arith.mulf %184, %167 : vector<2x128xf32>
    %194 = arith.mulf %178, %186 : vector<2x128xf32>
    %195 = arith.addf %193, %194 : vector<2x128xf32>
    %196 = math.tanh %195 : vector<2x128xf32>
    %197 = arith.mulf %192, %196 : vector<2x128xf32>
    %198 = vector.extract_strided_slice %27 {offsets = [12, 0], sizes = [2, 512], strides = [1, 1]} : vector<16x512xf32> to vector<2x512xf32>
    %cst_49 = arith.constant dense<0.000000e+00> : vector<2x512xf32>
    %199 = tpu.matmul %197, %29, %cst_49 {dimension_numbers = #tpu.dot_dimension_numbers<[1], [0], [0], [1], [0, 0, 1, 1], [], []>} : vector<2x128xf32>, vector<128x512xf32>, vector<2x512xf32> -> vector<2x512xf32>
    %200 = arith.addf %198, %199 : vector<2x512xf32>
    %201 = vector.extract_strided_slice %200 {offsets = [0, 0], sizes = [2, 128], strides = [1, 1]} : vector<2x512xf32> to vector<2x128xf32>
    %202 = arith.negf %201 : vector<2x128xf32>
    %203 = math.exp %202 : vector<2x128xf32>
    %cst_50 = arith.constant 1.000000e+00 : f32
    %204 = vector.broadcast %cst_50 : f32 to vector<2x128xf32>
    %205 = arith.addf %204, %203 : vector<2x128xf32>
    %206 = arith.divf %204, %205 : vector<2x128xf32>
    %207 = vector.extract_strided_slice %200 {offsets = [0, 128], sizes = [2, 128], strides = [1, 1]} : vector<2x512xf32> to vector<2x128xf32>
    %208 = arith.negf %207 : vector<2x128xf32>
    %209 = math.exp %208 : vector<2x128xf32>
    %cst_51 = arith.constant 1.000000e+00 : f32
    %210 = vector.broadcast %cst_51 : f32 to vector<2x128xf32>
    %211 = arith.addf %210, %209 : vector<2x128xf32>
    %212 = arith.divf %210, %211 : vector<2x128xf32>
    %213 = vector.extract_strided_slice %200 {offsets = [0, 256], sizes = [2, 128], strides = [1, 1]} : vector<2x512xf32> to vector<2x128xf32>
    %214 = math.tanh %213 : vector<2x128xf32>
    %215 = vector.extract_strided_slice %200 {offsets = [0, 384], sizes = [2, 128], strides = [1, 1]} : vector<2x512xf32> to vector<2x128xf32>
    %216 = arith.negf %215 : vector<2x128xf32>
    %217 = math.exp %216 : vector<2x128xf32>
    %cst_52 = arith.constant 1.000000e+00 : f32
    %218 = vector.broadcast %cst_52 : f32 to vector<2x128xf32>
    %219 = arith.addf %218, %217 : vector<2x128xf32>
    %220 = arith.divf %218, %219 : vector<2x128xf32>
    %221 = arith.mulf %212, %195 : vector<2x128xf32>
    %222 = arith.mulf %206, %214 : vector<2x128xf32>
    %223 = arith.addf %221, %222 : vector<2x128xf32>
    %224 = math.tanh %223 : vector<2x128xf32>
    %225 = arith.mulf %220, %224 : vector<2x128xf32>
    %226 = vector.extract_strided_slice %27 {offsets = [14, 0], sizes = [2, 512], strides = [1, 1]} : vector<16x512xf32> to vector<2x512xf32>
    %cst_53 = arith.constant dense<0.000000e+00> : vector<2x512xf32>
    %227 = tpu.matmul %225, %29, %cst_53 {dimension_numbers = #tpu.dot_dimension_numbers<[1], [0], [0], [1], [0, 0, 1, 1], [], []>} : vector<2x128xf32>, vector<128x512xf32>, vector<2x512xf32> -> vector<2x512xf32>
    %228 = arith.addf %226, %227 : vector<2x512xf32>
    %229 = vector.extract_strided_slice %228 {offsets = [0, 0], sizes = [2, 128], strides = [1, 1]} : vector<2x512xf32> to vector<2x128xf32>
    %230 = arith.negf %229 : vector<2x128xf32>
    %231 = math.exp %230 : vector<2x128xf32>
    %cst_54 = arith.constant 1.000000e+00 : f32
    %232 = vector.broadcast %cst_54 : f32 to vector<2x128xf32>
    %233 = arith.addf %232, %231 : vector<2x128xf32>
    %234 = arith.divf %232, %233 : vector<2x128xf32>
    %235 = vector.extract_strided_slice %228 {offsets = [0, 128], sizes = [2, 128], strides = [1, 1]} : vector<2x512xf32> to vector<2x128xf32>
    %236 = arith.negf %235 : vector<2x128xf32>
    %237 = math.exp %236 : vector<2x128xf32>
    %cst_55 = arith.constant 1.000000e+00 : f32
    %238 = vector.broadcast %cst_55 : f32 to vector<2x128xf32>
    %239 = arith.addf %238, %237 : vector<2x128xf32>
    %240 = arith.divf %238, %239 : vector<2x128xf32>
    %241 = vector.extract_strided_slice %228 {offsets = [0, 256], sizes = [2, 128], strides = [1, 1]} : vector<2x512xf32> to vector<2x128xf32>
    %242 = math.tanh %241 : vector<2x128xf32>
    %243 = vector.extract_strided_slice %228 {offsets = [0, 384], sizes = [2, 128], strides = [1, 1]} : vector<2x512xf32> to vector<2x128xf32>
    %244 = arith.negf %243 : vector<2x128xf32>
    %245 = math.exp %244 : vector<2x128xf32>
    %cst_56 = arith.constant 1.000000e+00 : f32
    %246 = vector.broadcast %cst_56 : f32 to vector<2x128xf32>
    %247 = arith.addf %246, %245 : vector<2x128xf32>
    %248 = arith.divf %246, %247 : vector<2x128xf32>
    %249 = arith.mulf %240, %223 : vector<2x128xf32>
    %250 = arith.mulf %234, %242 : vector<2x128xf32>
    %251 = arith.addf %249, %250 : vector<2x128xf32>
    %252 = math.tanh %251 : vector<2x128xf32>
    %253 = arith.mulf %248, %252 : vector<2x128xf32>
    %254 = tpu.concatenate %57, %85, %113, %141, %169, %197, %225, %253 in 0 : vector<2x128xf32>, vector<2x128xf32>, vector<2x128xf32>, vector<2x128xf32>, vector<2x128xf32>, vector<2x128xf32>, vector<2x128xf32>, vector<2x128xf32> -> vector<16x128xf32>
    %c0_57 = arith.constant 0 : index
    %c0_58 = arith.constant 0 : index
    %255 = vector.load %arg9[%c0_57, %c0_58] : memref<16x128xf32, #tpu.memory_space<vmem>>, vector<16x128xf32>
    tpu.vector_store %arg9[%c0_57, %c0_58], %254 {strides = array<i32>} : memref<16x128xf32, #tpu.memory_space<vmem>>, vector<16x128xf32>,
    %256 = arith.index_cast %arg2 : i32 to index
    %c0_59 = arith.constant 0 : index
    %c0_60 = arith.constant 0 : index
    %257 = vector.load %arg10[%256, %c0_59, %c0_60] : memref<4x2x128xf32, #tpu.memory_space<vmem>>, vector<1x2x128xf32>
    %258 = vector.shape_cast %257 : vector<1x2x128xf32> to vector<2x128xf32>
    %259 = vector.shape_cast %253 : vector<2x128xf32> to vector<1x2x128xf32>
    tpu.vector_store %arg10[%256, %c0_59, %c0_60], %259 {strides = array<i32>} : memref<4x2x128xf32, #tpu.memory_space<vmem>>, vector<1x2x128xf32>,
    %260 = arith.index_cast %arg2 : i32 to index
    %c0_61 = arith.constant 0 : index
    %c0_62 = arith.constant 0 : index
    %261 = vector.load %arg11[%260, %c0_61, %c0_62] : memref<4x2x128xf32, #tpu.memory_space<vmem>>, vector<1x2x128xf32>
    %262 = vector.shape_cast %261 : vector<1x2x128xf32> to vector<2x128xf32>
    %263 = vector.shape_cast %251 : vector<2x128xf32> to vector<1x2x128xf32>
    tpu.vector_store %arg11[%260, %c0_61, %c0_62], %263 {strides = array<i32>} : memref<4x2x128xf32, #tpu.memory_space<vmem>>, vector<1x2x128xf32>,
    return
  }
  func.func @transform_0(%arg0: i32, %arg1: i32, %arg2: i32) -> (i32, i32) {
    %c0_i32 = arith.constant 0 : i32
    %c0_i32_0 = arith.constant 0 : i32
    %c0_i32_1 = arith.constant 0 : i32
    return %c0_i32, %c0_i32_0 : i32, i32
  }
  func.func @transform_1(%arg0: i32, %arg1: i32, %arg2: i32) -> (i32, i32, i32, i32) {
    %c0_i32 = arith.constant 0 : i32
    %c0_i32_0 = arith.constant 0 : i32
    %c0_i32_1 = arith.constant 0 : i32
    return %arg1, %arg2, %c0_i32, %c0_i32_0 : i32, i32, i32, i32
  }
  func.func @transform_2(%arg0: i32, %arg1: i32, %arg2: i32) -> (i32, i32, i32, i32) {
    %c0_i32 = arith.constant 0 : i32
    %c0_i32_0 = arith.constant 0 : i32
    %c0_i32_1 = arith.constant 0 : i32
    return %arg1, %arg2, %c0_i32, %c0_i32_0 : i32, i32, i32, i32
  }
  func.func @transform_3(%arg0: i32, %arg1: i32, %arg2: i32) -> (i32, i32, i32, i32) {
    %c0_i32 = arith.constant 0 : i32
    %c0_i32_0 = arith.constant 0 : i32
    %c0_i32_1 = arith.constant 0 : i32
    return %arg1, %arg2, %c0_i32, %c0_i32_0 : i32, i32, i32, i32
  }
  func.func @transform_4(%arg0: i32, %arg1: i32, %arg2: i32) -> (i32, i32, i32) {
    %c0_i32 = arith.constant 0 : i32
    %c0_i32_0 = arith.constant 0 : i32
    %c0_i32_1 = arith.constant 0 : i32
    %c0_i32_2 = arith.constant 0 : i32
    return %c0_i32, %c0_i32_0, %c0_i32_1 : i32, i32, i32
  }
  func.func @transform_5(%arg0: i32, %arg1: i32, %arg2: i32) -> (i32, i32, i32) {
    %c0_i32 = arith.constant 0 : i32
    %c0_i32_0 = arith.constant 0 : i32
    %c0_i32_1 = arith.constant 0 : i32
    %c0_i32_2 = arith.constant 0 : i32
    return %c0_i32, %c0_i32_0, %c0_i32_1 : i32, i32, i32
  }
  func.func @transform_6(%arg0: i32, %arg1: i32, %arg2: i32) -> (i32, i32) {
    %c0_i32 = arith.constant 0 : i32
    %c0_i32_0 = arith.constant 0 : i32
    %c0_i32_1 = arith.constant 0 : i32
    return %c0_i32, %c0_i32_0 : i32, i32
  }
  func.func @transform_7(%arg0: i32, %arg1: i32, %arg2: i32) -> (i32, i32, i32) {
    %c0_i32 = arith.constant 0 : i32
    %c0_i32_0 = arith.constant 0 : i32
    %c0_i32_1 = arith.constant 0 : i32
    %c0_i32_2 = arith.constant 0 : i32
    return %c0_i32, %c0_i32_0, %c0_i32_1 : i32, i32, i32
  }
  func.func @transform_8(%arg0: i32, %arg1: i32, %arg2: i32) -> (i32, i32, i32) {
    %c0_i32 = arith.constant 0 : i32
    %c0_i32_0 = arith.constant 0 : i32
    %c0_i32_1 = arith.constant 0 : i32
    %c0_i32_2 = arith.constant 0 : i32
    return %c0_i32, %c0_i32_0, %c0_i32_1 : i32, i32, i32
  }
}

</mosaic_0001>

<llo_original>
// kernel: fused_lstm_forward.1
$region0: #{fused_lstm_forward.1}
  #allocation0 [shape = 'u32[]', space=smem, size = 0x4, offset = 0x4, fixed_abs, tag = 'smem constant byte address 0x4 - core index']
  #allocation1 [shape = 'u32[144,128]{1,0:T(1,128)}', space=vmem, size = 0x12000, scoped, tag = 'internal scratch']
  %s0 = inlined_call_operand.hbm [shape: f32[16,128], index: 0, kind: input, shape index: {}]
  %s1 = inlined_call_operand.hbm [shape: f32[8,4,128,512], index: 1, kind: input, shape index: {}]
  %s2 = inlined_call_operand.hbm [shape: f32[8,4,128,512], index: 2, kind: input, shape index: {}]
  %s3 = inlined_call_operand.hbm [shape: f32[8,4,1,512], index: 3, kind: input, shape index: {}]
  %s4 = inlined_call_operand.hbm [shape: f32[4,2,128], index: 4, kind: input, shape index: {}]
  %s5 = inlined_call_operand.hbm [shape: f32[4,2,128], index: 5, kind: input, shape index: {}]
  %s6 = inlined_call_operand.hbm [shape: f32[16,128], index: 6, kind: output, shape index: {0}]
  %s7 = inlined_call_operand.hbm [shape: f32[4,2,128], index: 7, kind: output, shape index: {1}]
  %s8 = inlined_call_operand.hbm [shape: f32[4,2,128], index: 8, kind: output, shape index: {2}]
  %9 = xla_tuple %s6, %s7, %s8
  %s10 = sld [smem:[#allocation0]]
  $region97: #{fused_lstm_forward.1} parent=0
    _
  %s12 = ssub.s32 1, %s10
  %s13 = scalar_select 0, %s12, %s10
  $region1: #{fused_lstm_forward.1} parent=0
    #allocation2 [shape = 'u8[8192]{0}', space=vmem, size = 0x2000, scoped, tag = 'input window, operand 0, single buffered']
    #allocation3 [shape = 's32[2]{0}', space=sflag, size = 0x8, scoped, tag = 'scoped memory for fused_lstm_forward.1']
    #allocation4 [shape = 's32[2]{0}', space=sflag, size = 0x8, scoped, tag = 'scoped memory for fused_lstm_forward.1']
    #allocation5 [shape = 'u8[524288]{0}', space=vmem, size = 0x80000, scoped, tag = 'input window, operand 1']
    #allocation6 [shape = 's32[2]{0}', space=sflag, size = 0x8, scoped, tag = 'scoped memory for fused_lstm_forward.1']
    #allocation7 [shape = 'u8[524288]{0}', space=vmem, size = 0x80000, scoped, tag = 'input window, operand 2']
    #allocation8 [shape = 'u8[4096]{0}', space=vmem, size = 0x1000, scoped, tag = 'input window, operand 3']
    #allocation9 [shape = 's32[2]{0}', space=sflag, size = 0x8, scoped, tag = 'scoped memory for fused_lstm_forward.1']
    #allocation10 [shape = 'u8[4096]{0}', space=vmem, size = 0x1000, scoped, tag = 'input window, operand 4, single buffered']
    #allocation11 [shape = 'u8[4096]{0}', space=vmem, size = 0x1000, scoped, tag = 'input window, operand 5, single buffered']
    #allocation12 [shape = 's32[1]{0}', space=sflag, size = 0x4, scoped, tag = 'scoped memory for fused_lstm_forward.1']
    #allocation13 [shape = 'u8[8192]{0}', space=vmem, size = 0x2000, scoped, tag = 'output window, operand 0, single buffered']
    #allocation14 [shape = 'u8[4096]{0}', space=vmem, size = 0x1000, scoped, tag = 'output window, operand 1, single buffered']
    #allocation15 [shape = 's32[1]{0}', space=sflag, size = 0x4, scoped, tag = 'scoped memory for fused_lstm_forward.1']
    #allocation16 [shape = 'u8[4096]{0}', space=vmem, size = 0x1000, scoped, tag = 'output window, operand 2, single buffered']
    %14 = vsyncpa [#allocation3], 0
    %15 = vsyncpa [#allocation6], 0
    %s16 = scalar_lea.sflag [#allocation6], 1
    %17 = vsyncpa %s16, 0
    %18 = vsyncpa [#allocation9], 0
    %s19 = scalar_lea.sflag [#allocation9], 1
    %20 = vsyncpa %s19, 0
    %21 = vsyncpa [#allocation12], 0
    %22 = vsyncpa [#allocation4], 0
    %23 = vsyncpa [#allocation15], 0
    loop: start=0, step=1, limit=98
    $region2: #{fused_lstm_forward.1} parent=1 // loop_pre_header
      _
    $region3: #{fused_lstm_forward.1} parent=1 // loop_header
      %s25 = sphi 0, %s29
      %p26 = scmp.ge.s32.totalorder %s25, 98
      %s32 = sphi 0, %s51
      %s33 = sphi 0, %s47
      %s34 = sphi 0, %s43
      %s35 = sphi 0, %s32
      %s36 = sphi 0, %s33
      %s37 = sphi 0, %s34
      %s38 = sphi 0, %s35
      %s39 = sphi 0, %s36
      %s40 = sphi 0, %s37
      %s52 = sphi 0, %s52
      %s54 = sphi 0, %s52
      %s55 = sphi 0, %s54
      %s69 = sphi 0, %s55
      %s77 = sphi 0, %s79
      %s80 = sphi 0, %s77
      %s81 = sphi 0, %s80
      %s97 = sphi 0, %s81
      %s105 = sphi 0, %s107
      %s108 = sphi 0, %s105
      %s109 = sphi 0, %s108
      %s125 = sphi 0, %s109
      %s133 = sphi 0, %s135
      %s136 = sphi 0, %s133
      %s137 = sphi 0, %s136
      %s153 = sphi 0, %s137
      %s157 = sphi 0, %s157
      %s159 = sphi 0, %s157
      %s160 = sphi 0, %s159
      %s174 = sphi 0, %s160
      %s178 = sphi 0, %s178
      %s180 = sphi 0, %s178
      %s181 = sphi 0, %s180
      %s195 = sphi 0, %s181
      %s199 = sphi 0, %s199
      %s201 = sphi 0, %s199
      %s202 = sphi 0, %s201
      %s216 = sphi 0, %s202
      %s220 = sphi 0, %s220
      %s222 = sphi 0, %s220
      %s223 = sphi 0, %s222
      %s237 = sphi 0, %s223
      %s241 = sphi 0, %s241
      %s243 = sphi 0, %s241
      %s244 = sphi 0, %s243
      %s258 = sphi 0, %s244
    $region4: #{fused_lstm_forward.1} parent=1 // loop_header_branch
      %28 = sbr.rel (%p26) target = $region8
    $region5: #{fused_lstm_forward.1} parent=1 // loop_body
      %s30 = ssub.s32 %s25, 1
      %s31 = ssub.s32 %s25, 2
      %s41 = sadd.s32 1, %s34
      %p42 = scmp.ge.s32.totalorder %s41, 4
      %s43 = scalar_select %p42, 0, %s41
      %s44 = sadd.s32 1, %s33
      %s45 = scalar_select %p42, %s44, %s33
      %p46 = scmp.ge.s32.totalorder %s45, 8
      %s47 = scalar_select %p46, 0, %s45
      %s48 = sadd.s32 1, %s32
      %s49 = scalar_select %p46, %s48, %s32
      %p50 = scmp.ge.s32.totalorder %s49, 3
      %s51 = scalar_select %p50, 0, %s49
      %s53 = sadd.s32 %s52, 1
      %p56 = scmp.eq.s32.totalorder %s25, 95
      %p57 = scmp.ne.s32.totalorder %s52, %s54
      %p58 = scmp.eq.s32.totalorder %s25, 0
      %p59 = por %p57, %p58
      %p60 = scmp.ne.s32.totalorder %s52, %s54
      %p61 = scmp.eq.s32.totalorder %s30, 95
      %p62 = por %p60, %p61
      %p63 = scmp.ne.s32.totalorder %s54, %s55
      %p64 = scmp.eq.s32.totalorder %s30, 0
      %p65 = por %p63, %p64
      %p66 = scmp.ne.s32.totalorder %s54, %s55
      %p67 = scmp.eq.s32.totalorder %s31, 95
      %p68 = por %p66, %p67
      %p70 = scmp.ne.s32.totalorder %s55, %s69
      %p71 = scmp.eq.s32.totalorder %s31, 0
      %p72 = por %p70, %p71
      %s73 = ssub.s32 %s33, %s47
      %s74 = ssub.s32 %s34, %s43
      %s75 = sor.u32 %s73, %s74
      %p76 = scmp.eq.s32.totalorder %s75, 0
      %s78 = sadd.s32 %s77, 1
      %s79 = scalar_select %p76, %s77, %s78
      %p82 = pneg %p76
      %p83 = scmp.eq.s32.totalorder %s25, 95
      %p84 = por %p82, %p83
      %p85 = scmp.ne.s32.totalorder %s77, %s80
      %p86 = scmp.eq.s32.totalorder %s25, 0
      %p87 = por %p85, %p86
      %p88 = scmp.ne.s32.totalorder %s77, %s80
      %p89 = scmp.eq.s32.totalorder %s30, 95
      %p90 = por %p88, %p89
      %p91 = scmp.ne.s32.totalorder %s80, %s81
      %p92 = scmp.eq.s32.totalorder %s30, 0
      %p93 = por %p91, %p92
      %p94 = scmp.ne.s32.totalorder %s80, %s81
      %p95 = scmp.eq.s32.totalorder %s31, 95
      %p96 = por %p94, %p95
      %p98 = scmp.ne.s32.totalorder %s81, %s97
      %p99 = scmp.eq.s32.totalorder %s31, 0
      %p100 = por %p98, %p99
      %s101 = ssub.s32 %s33, %s47
      %s102 = ssub.s32 %s34, %s43
      %s103 = sor.u32 %s101, %s102
      %p104 = scmp.eq.s32.totalorder %s103, 0
      %s106 = sadd.s32 %s105, 1
      %s107 = scalar_select %p104, %s105, %s106
      %p110 = pneg %p104
      %p111 = scmp.eq.s32.totalorder %s25, 95
      %p112 = por %p110, %p111
      %p113 = scmp.ne.s32.totalorder %s105, %s108
      %p114 = scmp.eq.s32.totalorder %s25, 0
      %p115 = por %p113, %p114
      %p116 = scmp.ne.s32.totalorder %s105, %s108
      %p117 = scmp.eq.s32.totalorder %s30, 95
      %p118 = por %p116, %p117
      %p119 = scmp.ne.s32.totalorder %s108, %s109
      %p120 = scmp.eq.s32.totalorder %s30, 0
      %p121 = por %p119, %p120
      %p122 = scmp.ne.s32.totalorder %s108, %s109
      %p123 = scmp.eq.s32.totalorder %s31, 95
      %p124 = por %p122, %p123
      %p126 = scmp.ne.s32.totalorder %s109, %s125
      %p127 = scmp.eq.s32.totalorder %s31, 0
      %p128 = por %p126, %p127
      %s129 = ssub.s32 %s33, %s47
      %s130 = ssub.s32 %s34, %s43
      %s131 = sor.u32 %s129, %s130
      %p132 = scmp.eq.s32.totalorder %s131, 0
      %s134 = sadd.s32 %s133, 1
      %s135 = scalar_select %p132, %s133, %s134
      %p138 = pneg %p132
      %p139 = scmp.eq.s32.totalorder %s25, 95
      %p140 = por %p138, %p139
      %p141 = scmp.ne.s32.totalorder %s133, %s136
      %p142 = scmp.eq.s32.totalorder %s25, 0
      %p143 = por %p141, %p142
      %p144 = scmp.ne.s32.totalorder %s133, %s136
      %p145 = scmp.eq.s32.totalorder %s30, 95
      %p146 = por %p144, %p145
      %p147 = scmp.ne.s32.totalorder %s136, %s137
      %p148 = scmp.eq.s32.totalorder %s30, 0
      %p149 = por %p147, %p148
      %p150 = scmp.ne.s32.totalorder %s136, %s137
      %p151 = scmp.eq.s32.totalorder %s31, 95
      %p152 = por %p150, %p151
      %p154 = scmp.ne.s32.totalorder %s137, %s153
      %p155 = scmp.eq.s32.totalorder %s31, 0
      %p156 = por %p154, %p155
      %s158 = sadd.s32 %s157, 1
      %p161 = scmp.eq.s32.totalorder %s25, 95
      %p162 = scmp.ne.s32.totalorder %s157, %s159
      %p163 = scmp.eq.s32.totalorder %s25, 0
      %p164 = por %p162, %p163
      %p165 = scmp.ne.s32.totalorder %s157, %s159
      %p166 = scmp.eq.s32.totalorder %s30, 95
      %p167 = por %p165, %p166
      %p168 = scmp.ne.s32.totalorder %s159, %s160
      %p169 = scmp.eq.s32.totalorder %s30, 0
      %p170 = por %p168, %p169
      %p171 = scmp.ne.s32.totalorder %s159, %s160
      %p172 = scmp.eq.s32.totalorder %s31, 95
      %p173 = por %p171, %p172
      %p175 = scmp.ne.s32.totalorder %s160, %s174
      %p176 = scmp.eq.s32.totalorder %s31, 0
      %p177 = por %p175, %p176
      %s179 = sadd.s32 %s178, 1
      %p182 = scmp.eq.s32.totalorder %s25, 95
      %p183 = scmp.ne.s32.totalorder %s178, %s180
      %p184 = scmp.eq.s32.totalorder %s25, 0
      %p185 = por %p183, %p184
      %p186 = scmp.ne.s32.totalorder %s178, %s180
      %p187 = scmp.eq.s32.totalorder %s30, 95
      %p188 = por %p186, %p187
      %p189 = scmp.ne.s32.totalorder %s180, %s181
      %p190 = scmp.eq.s32.totalorder %s30, 0
      %p191 = por %p189, %p190
      %p192 = scmp.ne.s32.totalorder %s180, %s181
      %p193 = scmp.eq.s32.totalorder %s31, 95
      %p194 = por %p192, %p193
      %p196 = scmp.ne.s32.totalorder %s181, %s195
      %p197 = scmp.eq.s32.totalorder %s31, 0
      %p198 = por %p196, %p197
      %s200 = sadd.s32 %s199, 1
      %p203 = scmp.eq.s32.totalorder %s25, 95
      %p204 = scmp.ne.s32.totalorder %s199, %s201
      %p205 = scmp.eq.s32.totalorder %s25, 0
      %p206 = por %p204, %p205
      %p207 = scmp.ne.s32.totalorder %s199, %s201
      %p208 = scmp.eq.s32.totalorder %s30, 95
      %p209 = por %p207, %p208
      %p210 = scmp.ne.s32.totalorder %s201, %s202
      %p211 = scmp.eq.s32.totalorder %s30, 0
      %p212 = por %p210, %p211
      %p213 = scmp.ne.s32.totalorder %s201, %s202
      %p214 = scmp.eq.s32.totalorder %s31, 95
      %p215 = por %p213, %p214
      %p217 = scmp.ne.s32.totalorder %s202, %s216
      %p218 = scmp.eq.s32.totalorder %s31, 0
      %p219 = por %p217, %p218
      %s221 = sadd.s32 %s220, 1
      %p224 = scmp.eq.s32.totalorder %s25, 95
      %p225 = scmp.ne.s32.totalorder %s220, %s222
      %p226 = scmp.eq.s32.totalorder %s25, 0
      %p227 = por %p225, %p226
      %p228 = scmp.ne.s32.totalorder %s220, %s222
      %p229 = scmp.eq.s32.totalorder %s30, 95
      %p230 = por %p228, %p229
      %p231 = scmp.ne.s32.totalorder %s222, %s223
      %p232 = scmp.eq.s32.totalorder %s30, 0
      %p233 = por %p231, %p232
      %p234 = scmp.ne.s32.totalorder %s222, %s223
      %p235 = scmp.eq.s32.totalorder %s31, 95
      %p236 = por %p234, %p235
      %p238 = scmp.ne.s32.totalorder %s223, %s237
      %p239 = scmp.eq.s32.totalorder %s31, 0
      %p240 = por %p238, %p239
      %s242 = sadd.s32 %s241, 1
      %p245 = scmp.eq.s32.totalorder %s25, 95
      %p246 = scmp.ne.s32.totalorder %s241, %s243
      %p247 = scmp.eq.s32.totalorder %s25, 0
      %p248 = por %p246, %p247
      %p249 = scmp.ne.s32.totalorder %s241, %s243
      %p250 = scmp.eq.s32.totalorder %s30, 95
      %p251 = por %p249, %p250
      %p252 = scmp.ne.s32.totalorder %s243, %s244
      %p253 = scmp.eq.s32.totalorder %s30, 0
      %p254 = por %p252, %p253
      %p255 = scmp.ne.s32.totalorder %s243, %s244
      %p256 = scmp.eq.s32.totalorder %s31, 95
      %p257 = por %p255, %p256
      %p259 = scmp.ne.s32.totalorder %s244, %s258
      %p260 = scmp.eq.s32.totalorder %s31, 0
      %p261 = por %p259, %p260
      %p262 = scmp.le.s32.totalorder 1, %s25
      %p263 = scmp.lt.s32.totalorder %s25, 97
      %p264 = pnand %p262, %p263
      %p265 = pneg %p264
      // Predicated region
      $region9: #{fused_lstm_forward.1} parent=5 // pred_check
        _
      $region10: #{fused_lstm_forward.1} parent=5 // pred_check_branch
        %267 = sbr.rel (%p264) target = $region12
      $region11: #{fused_lstm_forward.1} parent=5 // pred_region
        %s268 = ssub.s32 %s25, 1
        // Predicated region
        $region13: #{fused_lstm_forward.1} parent=11 // pred_check
          %p269 = pneg %p65
        $region14: #{fused_lstm_forward.1} parent=11 // pred_check_branch
          %271 = sbr.rel (%p269) target = $region16
        $region15: #{fused_lstm_forward.1} parent=11 // pred_region
          %s273 = ssub.s32 256, 256
          %274 = vsyncadd [#allocation3], %s273
          %s275 = sshll.u32 [#allocation2], 4
          %s276 = int_to_ptr.vmem [resolvable:$true] %s275
          %281 = dma.hbm_to_vmem [thread:$0]  %s0, 256, %s276, [#allocation3], 128, 128, 8
        $region16: #{fused_lstm_forward.1} parent=11 // pred_fallthru
          _
        // Predicated region
        $region17: #{fused_lstm_forward.1} parent=11 // pred_check
          %p282 = pneg %p170
        $region18: #{fused_lstm_forward.1} parent=11 // pred_check_branch
          %284 = sbr.rel (%p282) target = $region20
        $region19: #{fused_lstm_forward.1} parent=11 // pred_region
          %s286 = ssub.s32 128, 128
          %287 = vsyncadd [#allocation9], %s286
          %s288 = sshll.u32 [#allocation10], 4
          %s289 = int_to_ptr.vmem [resolvable:$true] %s288
          %294 = dma.hbm_to_vmem [thread:$0]  %s4, 128, %s289, [#allocation9], 32, 32, 2
        $region20: #{fused_lstm_forward.1} parent=11 // pred_fallthru
          _
        // Predicated region
        $region21: #{fused_lstm_forward.1} parent=11 // pred_check
          %p295 = pneg %p191
        $region22: #{fused_lstm_forward.1} parent=11 // pred_check_branch
          %297 = sbr.rel (%p295) target = $region24
        $region23: #{fused_lstm_forward.1} parent=11 // pred_region
          %s299 = ssub.s32 128, 128
          %300 = vsyncadd [#allocation12], %s299
          %s301 = sshll.u32 [#allocation11], 4
          %s302 = int_to_ptr.vmem [resolvable:$true] %s301
          %307 = dma.hbm_to_vmem [thread:$0]  %s5, 128, %s302, [#allocation12], 32, 32, 2
        $region24: #{fused_lstm_forward.1} parent=11 // pred_fallthru
          _
      $region12: #{fused_lstm_forward.1} parent=5 // pred_fallthru
        _
      %p308 = scmp.lt.s32.totalorder %s25, 96
      // Predicated region
      $region25: #{fused_lstm_forward.1} parent=5 // pred_check
        %p309 = pneg %p308
      $region26: #{fused_lstm_forward.1} parent=5 // pred_check_branch
        %311 = sbr.rel (%p309) target = $region28
      $region27: #{fused_lstm_forward.1} parent=5 // pred_region
        // Predicated region
        $region29: #{fused_lstm_forward.1} parent=27 // pred_check
          %p312 = pneg %p87
        $region30: #{fused_lstm_forward.1} parent=27 // pred_check_branch
          %314 = sbr.rel (%p312) target = $region32
        $region31: #{fused_lstm_forward.1} parent=27 // pred_region
          %s315 = sand.u32 %s25, 1
          %s316 = scalar_lea.sflag [#allocation6], %s315
          %s317 = sand.u32 %s77, 1
          %s318 = smul.addr %s317, 512
          %s319 = scalar_lea.vmem [#allocation5], %s318
          %s321 = ssub.s32 8192, 8192
          %322 = vsyncadd %s316, %s321
          %s323 = smul.addr %s34, 64
          %s324 = smul.addr %s33, 256
          %s325 = sadd.s32 %s323, %s324
          %s326 = smul.addr %s325, 128
          %s327 = scalar_lea.hbm %s1, %s326
          %s328 = sshll.u32 %s319, 4
          %s329 = int_to_ptr.vmem [resolvable:$true] %s328
          %334 = dma.hbm_to_vmem [thread:$0]  %s327, 8192, %s329, %s316, 512, 512, 32
        $region32: #{fused_lstm_forward.1} parent=27 // pred_fallthru
          _
        // Predicated region
        $region33: #{fused_lstm_forward.1} parent=27 // pred_check
          %p335 = pneg %p115
        $region34: #{fused_lstm_forward.1} parent=27 // pred_check_branch
          %337 = sbr.rel (%p335) target = $region36
        $region35: #{fused_lstm_forward.1} parent=27 // pred_region
          %s338 = sand.u32 %s25, 1
          %s339 = scalar_lea.sflag [#allocation6], %s338
          %s340 = sand.u32 %s105, 1
          %s341 = smul.addr %s340, 512
          %s342 = scalar_lea.vmem [#allocation7], %s341
          %s344 = ssub.s32 8192, 8192
          %345 = vsyncadd %s339, %s344
          %s346 = smul.addr %s34, 64
          %s347 = smul.addr %s33, 256
          %s348 = sadd.s32 %s346, %s347
          %s349 = smul.addr %s348, 128
          %s350 = scalar_lea.hbm %s2, %s349
          %s351 = sshll.u32 %s342, 4
          %s352 = int_to_ptr.vmem [resolvable:$true] %s351
          %357 = dma.hbm_to_vmem [thread:$0]  %s350, 8192, %s352, %s339, 512, 512, 32
        $region36: #{fused_lstm_forward.1} parent=27 // pred_fallthru
          _
        // Predicated region
        $region37: #{fused_lstm_forward.1} parent=27 // pred_check
          %p358 = pneg %p143
        $region38: #{fused_lstm_forward.1} parent=27 // pred_check_branch
          %360 = sbr.rel (%p358) target = $region40
        $region39: #{fused_lstm_forward.1} parent=27 // pred_region
          %s361 = sand.u32 %s25, 1
          %s362 = scalar_lea.sflag [#allocation9], %s361
          %s363 = sand.u32 %s133, 1
          %s364 = smul.addr %s363, 4
          %s365 = scalar_lea.vmem [#allocation8], %s364
          %s367 = ssub.s32 64, 64
          %368 = vsyncadd %s362, %s367
          %s369 = smul.addr %s34, 4
          %s370 = smul.addr %s33, 16
          %s371 = sadd.s32 %s369, %s370
          %s372 = smul.addr %s371, 16
          %s373 = scalar_lea.hbm %s3, %s372
          %s375 = sshll.u32 %s365, 4
          %s376 = int_to_ptr.vmem [resolvable:$true] %s375
          %378 = dma.hbm_to_vmem [thread:$0]  %s373, 64, %s376, %s362
        $region40: #{fused_lstm_forward.1} parent=27 // pred_fallthru
          _
      $region28: #{fused_lstm_forward.1} parent=5 // pred_fallthru
        _
      %p379 = scmp.le.s32.totalorder 1, %s25
      %p380 = scmp.lt.s32.totalorder %s25, 97
      %p381 = pnand %p379, %p380
      %p382 = pneg %p381
      // Predicated region
      $region41: #{fused_lstm_forward.1} parent=5 // pred_check
        _
      $region42: #{fused_lstm_forward.1} parent=5 // pred_check_branch
        %384 = sbr.rel (%p381) target = $region44
      $region43: #{fused_lstm_forward.1} parent=5 // pred_region
        %s385 = ssub.s32 %s25, 1
        // Predicated region
        $region45: #{fused_lstm_forward.1} parent=43 // pred_check
          %p386 = pneg %p65
        $region46: #{fused_lstm_forward.1} parent=43 // pred_check_branch
          %388 = sbr.rel (%p386) target = $region48
        $region47: #{fused_lstm_forward.1} parent=43 // pred_region
          %389 = dma.done [#allocation3], 256
        $region48: #{fused_lstm_forward.1} parent=43 // pred_fallthru
          _
        %s390 = sand.u32 %s30, 1
        %s391 = scalar_lea.sflag [#allocation6], %s390
        %s392 = sand.u32 %s80, 1
        %s393 = smul.addr %s392, 512
        %s394 = scalar_lea.vmem [#allocation5], %s393
        // Predicated region
        $region49: #{fused_lstm_forward.1} parent=43 // pred_check
          %p395 = pneg %p93
        $region50: #{fused_lstm_forward.1} parent=43 // pred_check_branch
          %397 = sbr.rel (%p395) target = $region52
        $region51: #{fused_lstm_forward.1} parent=43 // pred_region
          %398 = dma.done %s391, 8192
        $region52: #{fused_lstm_forward.1} parent=43 // pred_fallthru
          _
        %s399 = sand.u32 %s30, 1
        %s400 = scalar_lea.sflag [#allocation6], %s399
        %s401 = sand.u32 %s108, 1
        %s402 = smul.addr %s401, 512
        %s403 = scalar_lea.vmem [#allocation7], %s402
        // Predicated region
        $region53: #{fused_lstm_forward.1} parent=43 // pred_check
          %p404 = pneg %p121
        $region54: #{fused_lstm_forward.1} parent=43 // pred_check_branch
          %406 = sbr.rel (%p404) target = $region56
        $region55: #{fused_lstm_forward.1} parent=43 // pred_region
          %407 = dma.done %s400, 8192
        $region56: #{fused_lstm_forward.1} parent=43 // pred_fallthru
          _
        %s408 = sand.u32 %s30, 1
        %s409 = scalar_lea.sflag [#allocation9], %s408
        %s410 = sand.u32 %s136, 1
        %s411 = smul.addr %s410, 4
        %s412 = scalar_lea.vmem [#allocation8], %s411
        // Predicated region
        $region57: #{fused_lstm_forward.1} parent=43 // pred_check
          %p413 = pneg %p149
        $region58: #{fused_lstm_forward.1} parent=43 // pred_check_branch
          %415 = sbr.rel (%p413) target = $region60
        $region59: #{fused_lstm_forward.1} parent=43 // pred_region
          %416 = dma.done %s409, 64
        $region60: #{fused_lstm_forward.1} parent=43 // pred_fallthru
          _
        // Predicated region
        $region61: #{fused_lstm_forward.1} parent=43 // pred_check
          %p417 = pneg %p170
        $region62: #{fused_lstm_forward.1} parent=43 // pred_check_branch
          %419 = sbr.rel (%p417) target = $region64
        $region63: #{fused_lstm_forward.1} parent=43 // pred_region
          %420 = dma.done [#allocation9], 128
        $region64: #{fused_lstm_forward.1} parent=43 // pred_fallthru
          _
        // Predicated region
        $region65: #{fused_lstm_forward.1} parent=43 // pred_check
          %p421 = pneg %p191
        $region66: #{fused_lstm_forward.1} parent=43 // pred_check_branch
          %423 = sbr.rel (%p421) target = $region68
        $region67: #{fused_lstm_forward.1} parent=43 // pred_region
          %424 = dma.done [#allocation12], 128
        $region68: #{fused_lstm_forward.1} parent=43 // pred_fallthru
          _
        %p425 = pneg %p65
        %p426 = pneg %p62
        %s427 = sand.u32 %s30, 1
        %s428 = scalar_lea.sflag [#allocation6], %s427
        %s429 = sand.u32 %s80, 1
        %s430 = smul.addr %s429, 512
        %s431 = scalar_lea.vmem [#allocation5], %s430
        %p432 = pneg %p93
        %p433 = pneg %p90
        %s434 = sand.u32 %s30, 1
        %s435 = scalar_lea.sflag [#allocation6], %s434
        %s436 = sand.u32 %s108, 1
        %s437 = smul.addr %s436, 512
        %s438 = scalar_lea.vmem [#allocation7], %s437
        %p439 = pneg %p121
        %p440 = pneg %p118
        %s441 = sand.u32 %s30, 1
        %s442 = scalar_lea.sflag [#allocation9], %s441
        %s443 = sand.u32 %s136, 1
        %s444 = smul.addr %s443, 4
        %s445 = scalar_lea.vmem [#allocation8], %s444
        %p446 = pneg %p149
        %p447 = pneg %p146
        %p448 = pneg %p170
        %p449 = pneg %p167
        %p450 = pneg %p191
        %p451 = pneg %p188
        %p452 = pneg %p212
        %p453 = pneg %p209
        %p454 = pneg %p233
        %p455 = pneg %p230
        %p456 = pneg %p254
        %p457 = pneg %p251
        %p458 = scmp.eq.s32.totalorder %s36, 0
        %p459 = scmp.eq.s32.totalorder %s37, 0
        %p460 = pnand %p458, %p459
        %p461 = pneg %p460
        %v462 = vld [vmem:[#allocation2] sm:$0xff]
        %v463 = vld [vmem:[#allocation2 + $0x8] sm:$0xff]
        %v464 = vld [vmem:[#allocation13] sm:$0xff]
        %v465 = vld [vmem:[#allocation13 + $0x8] sm:$0xff]
        %s466 = scalar_select %p461, 1, 0
        %v467 = vstv %s466
        %vm468 = vcmp.eq.s32.totalorder %v467, 1
        %v469 = vsel %vm468, %v462, %v464
        %v470 = vsel %vm468, %v463, %v465
        %s471 = smul.u32 %s37, 2
        %s472 = scalar_lea.vmem [#allocation10], %s471
        %v473 = vld [vmem:[%s472] sm:$0x3]
        %s474 = scalar_lea.vmem [#allocation14], %s471
        %v475 = vld [vmem:[%s474] sm:$0x3]
        %s476 = scalar_select %p458, 1, 0
        %v477 = vstv %s476
        %vm478 = vcmp.eq.s32.totalorder %v477, 1
        %v479 = vsel %vm478, %v473, %v475
        %s480 = scalar_lea.vmem [#allocation11], %s471
        %v481 = vld [vmem:[%s480] sm:$0x3]
        %s482 = scalar_lea.vmem [#allocation16], %s471
        %v483 = vld [vmem:[%s482] sm:$0x3]
        %v484 = vsel %vm478, %v481, %v483
        %v485 = vld [vmem:[%s394] sm:$0xff]
        %v486 = vld [vmem:[%s394 + $0x8] sm:$0xff]
        %v487 = vld [vmem:[%s394 + $0x10] sm:$0xff]
        %v488 = vld [vmem:[%s394 + $0x18] sm:$0xff]
        %v489 = vld [vmem:[%s394 + $0x20] sm:$0xff]
        %v490 = vld [vmem:[%s394 + $0x28] sm:$0xff]
        %v491 = vld [vmem:[%s394 + $0x30] sm:$0xff]
        %v492 = vld [vmem:[%s394 + $0x38] sm:$0xff]
        %v493 = vld [vmem:[%s394 + $0x40] sm:$0xff]
        %v494 = vld [vmem:[%s394 + $0x48] sm:$0xff]
        %v495 = vld [vmem:[%s394 + $0x50] sm:$0xff]
        %v496 = vld [vmem:[%s394 + $0x58] sm:$0xff]
        %v497 = vld [vmem:[%s394 + $0x60] sm:$0xff]
        %v498 = vld [vmem:[%s394 + $0x68] sm:$0xff]
        %v499 = vld [vmem:[%s394 + $0x70] sm:$0xff]
        %v500 = vld [vmem:[%s394 + $0x78] sm:$0xff]
        %v501 = vld [vmem:[%s394 + $0x80] sm:$0xff]
        %v502 = vld [vmem:[%s394 + $0x88] sm:$0xff]
        %v503 = vld [vmem:[%s394 + $0x90] sm:$0xff]
        %v504 = vld [vmem:[%s394 + $0x98] sm:$0xff]
        %v505 = vld [vmem:[%s394 + $0xa0] sm:$0xff]
        %v506 = vld [vmem:[%s394 + $0xa8] sm:$0xff]
        %v507 = vld [vmem:[%s394 + $0xb0] sm:$0xff]
        %v508 = vld [vmem:[%s394 + $0xb8] sm:$0xff]
        %v509 = vld [vmem:[%s394 + $0xc0] sm:$0xff]
        %v510 = vld [vmem:[%s394 + $0xc8] sm:$0xff]
        %v511 = vld [vmem:[%s394 + $0xd0] sm:$0xff]
        %v512 = vld [vmem:[%s394 + $0xd8] sm:$0xff]
        %v513 = vld [vmem:[%s394 + $0xe0] sm:$0xff]
        %v514 = vld [vmem:[%s394 + $0xe8] sm:$0xff]
        %v515 = vld [vmem:[%s394 + $0xf0] sm:$0xff]
        %v516 = vld [vmem:[%s394 + $0xf8] sm:$0xff]
        %v517 = vld [vmem:[%s394 + $0x100] sm:$0xff]
        %v518 = vld [vmem:[%s394 + $0x108] sm:$0xff]
        %v519 = vld [vmem:[%s394 + $0x110] sm:$0xff]
        %v520 = vld [vmem:[%s394 + $0x118] sm:$0xff]
        %v521 = vld [vmem:[%s394 + $0x120] sm:$0xff]
        %v522 = vld [vmem:[%s394 + $0x128] sm:$0xff]
        %v523 = vld [vmem:[%s394 + $0x130] sm:$0xff]
        %v524 = vld [vmem:[%s394 + $0x138] sm:$0xff]
        %v525 = vld [vmem:[%s394 + $0x140] sm:$0xff]
        %v526 = vld [vmem:[%s394 + $0x148] sm:$0xff]
        %v527 = vld [vmem:[%s394 + $0x150] sm:$0xff]
        %v528 = vld [vmem:[%s394 + $0x158] sm:$0xff]
        %v529 = vld [vmem:[%s394 + $0x160] sm:$0xff]
        %v530 = vld [vmem:[%s394 + $0x168] sm:$0xff]
        %v531 = vld [vmem:[%s394 + $0x170] sm:$0xff]
        %v532 = vld [vmem:[%s394 + $0x178] sm:$0xff]
        %v533 = vld [vmem:[%s394 + $0x180] sm:$0xff]
        %v534 = vld [vmem:[%s394 + $0x188] sm:$0xff]
        %v535 = vld [vmem:[%s394 + $0x190] sm:$0xff]
        %v536 = vld [vmem:[%s394 + $0x198] sm:$0xff]
        %v537 = vld [vmem:[%s394 + $0x1a0] sm:$0xff]
        %v538 = vld [vmem:[%s394 + $0x1a8] sm:$0xff]
        %v539 = vld [vmem:[%s394 + $0x1b0] sm:$0xff]
        %v540 = vld [vmem:[%s394 + $0x1b8] sm:$0xff]
        %v541 = vld [vmem:[%s394 + $0x1c0] sm:$0xff]
        %v542 = vld [vmem:[%s394 + $0x1c8] sm:$0xff]
        %v543 = vld [vmem:[%s394 + $0x1d0] sm:$0xff]
        %v544 = vld [vmem:[%s394 + $0x1d8] sm:$0xff]
        %v545 = vld [vmem:[%s394 + $0x1e0] sm:$0xff]
        %v546 = vld [vmem:[%s394 + $0x1e8] sm:$0xff]
        %v547 = vld [vmem:[%s394 + $0x1f0] sm:$0xff]
        %v548 = vld [vmem:[%s394 + $0x1f8] sm:$0xff]
        %v549 = vld [vmem:[%s412] sm:$0xf]
        %v551 = vlaneseq
        %v552 = vshrl.u32 %v551, 7
        %v553 = vsub.s32 0, %v552
        %v554 = vrot.slane %v549, %v553
        %v555 = vlaneseq
        %v556 = vshrl.u32 %v555, 7
        %v557 = vsub.s32 1, %v556
        %v558 = vrot.slane %v549, %v557
        %v559 = vlaneseq
        %v560 = vshrl.u32 %v559, 7
        %v561 = vsub.s32 2, %v560
        %v562 = vrot.slane %v549, %v561
        %v563 = vlaneseq
        %v564 = vshrl.u32 %v563, 7
        %v565 = vsub.s32 3, %v564
        %v566 = vrot.slane %v549, %v565
        %571 = vmatprep.subr.mxu0 %v486
        %572 = vmatpush1.msra.mxu0 %v485
        %573 = vmatprep.subr.mxu0 %v490
        %574 = vmatpush1.msra.mxu0 %v489
        %575 = vmatprep.subr.mxu0 %v494
        %576 = vmatpush1.msra.mxu0 %v493
        %577 = vmatprep.subr.mxu0 %v498
        %578 = vmatpush1.msra.mxu0 %v497
        %579 = vmatprep.subr.mxu0 %v502
        %580 = vmatpush1.msra.mxu0 %v501
        %581 = vmatprep.subr.mxu0 %v506
        %582 = vmatpush1.msra.mxu0 %v505
        %583 = vmatprep.subr.mxu0 %v510
        %584 = vmatpush1.msra.mxu0 %v509
        %585 = vmatprep.subr.mxu0 %v514
        %586 = vmatpush1.msra.mxu0 %v513
        %587 = vmatprep.subr.mxu0 %v518
        %588 = vmatpush1.msra.mxu0 %v517
        %589 = vmatprep.subr.mxu0 %v522
        %590 = vmatpush1.msra.mxu0 %v521
        %591 = vmatprep.subr.mxu0 %v526
        %592 = vmatpush1.msra.mxu0 %v525
        %593 = vmatprep.subr.mxu0 %v530
        %594 = vmatpush1.msra.mxu0 %v529
        %595 = vmatprep.subr.mxu0 %v534
        %596 = vmatpush1.msra.mxu0 %v533
        %597 = vmatprep.subr.mxu0 %v538
        %598 = vmatpush1.msra.mxu0 %v537
        %599 = vmatprep.subr.mxu0 %v542
        %600 = vmatpush1.msra.mxu0 %v541
        %601 = vmatprep.subr.mxu0 %v546
        %602 = vmatpush1.msra.mxu0 %v545
        %603 = vmatprep.subr.mxu0 0.0
        %604 = vmatpush1.msra.mxu0 0.0
        %605 = vmatprep.subr.mxu0 0.0
        %606 = vmatpush1.msra.mxu0 0.0
        %607 = vmatprep.subr.mxu0 0.0
        %608 = vmatpush1.msra.mxu0 0.0
        %609 = vmatprep.subr.mxu0 0.0
        %610 = vmatpush1.msra.mxu0 0.0
        %611 = vmatprep.subr.mxu0 0.0
        %612 = vmatpush1.msra.mxu0 0.0
        %613 = vmatprep.subr.mxu0 0.0
        %614 = vmatpush1.msra.mxu0 0.0
        %615 = vmatprep.subr.mxu0 0.0
        %616 = vmatpush1.msra.mxu0 0.0
        %617 = vmatprep.subr.mxu0 0.0
        %618 = vmatpush1.msra.mxu0 0.0
        %619 = vmatprep.subr.mxu0 0.0
        %620 = vmatpush1.msra.mxu0 0.0
        %621 = vmatprep.subr.mxu0 0.0
        %622 = vmatpush1.msra.mxu0 0.0
        %623 = vmatprep.subr.mxu0 0.0
        %624 = vmatpush1.msra.mxu0 0.0
        %625 = vmatprep.subr.mxu0 0.0
        %626 = vmatpush1.msra.mxu0 0.0
        %627 = vmatprep.subr.mxu0 0.0
        %628 = vmatpush1.msra.mxu0 0.0
        %629 = vmatprep.subr.mxu0 0.0
        %630 = vmatpush1.msra.mxu0 0.0
        %631 = vmatprep.subr.mxu0 0.0
        %632 = vmatpush1.msra.mxu0 0.0
        %633 = vmatprep.subr.mxu0 0.0
        %634 = vmatpush1.msra.mxu0 0.0
        %635 = vmatprep.mubr.f32.mxu0 0.0
        %636 = vmatmul.mubr.f32.gmra.mrb[0].mxu0 %v469
        %v637 = vpop.f32.mrb[0].mxu0
        %v638 = vadd.f32 %v554, %v637
        %v639 = vpop.f32.mrb[0].mxu0
        %v640 = vadd.f32 %v558, %v639
        %641 = vmatprep.mubr.f32.mxu0 0.0
        %642 = vmatmul.mubr.f32.gmra.mrb[0].mxu0 %v470
        %v643 = vpop.f32.mrb[0].mxu0
        %v644 = vadd.f32 %v554, %v643
        %v645 = vpop.f32.mrb[0].mxu0
        %v646 = vadd.f32 %v558, %v645
        %647 = vdwg.mxu0
        %648 = vmatprep.subr.mxu0 %v488
        %649 = vmatpush1.msra.mxu0 %v487
        %650 = vmatprep.subr.mxu0 %v492
        %651 = vmatpush1.msra.mxu0 %v491
        %652 = vmatprep.subr.mxu0 %v496
        %653 = vmatpush1.msra.mxu0 %v495
        %654 = vmatprep.subr.mxu0 %v500
        %655 = vmatpush1.msra.mxu0 %v499
        %656 = vmatprep.subr.mxu0 %v504
        %657 = vmatpush1.msra.mxu0 %v503
        %658 = vmatprep.subr.mxu0 %v508
        %659 = vmatpush1.msra.mxu0 %v507
        %660 = vmatprep.subr.mxu0 %v512
        %661 = vmatpush1.msra.mxu0 %v511
        %662 = vmatprep.subr.mxu0 %v516
        %663 = vmatpush1.msra.mxu0 %v515
        %664 = vmatprep.subr.mxu0 %v520
        %665 = vmatpush1.msra.mxu0 %v519
        %666 = vmatprep.subr.mxu0 %v524
        %667 = vmatpush1.msra.mxu0 %v523
        %668 = vmatprep.subr.mxu0 %v528
        %669 = vmatpush1.msra.mxu0 %v527
        %670 = vmatprep.subr.mxu0 %v532
        %671 = vmatpush1.msra.mxu0 %v531
        %672 = vmatprep.subr.mxu0 %v536
        %673 = vmatpush1.msra.mxu0 %v535
        %674 = vmatprep.subr.mxu0 %v540
        %675 = vmatpush1.msra.mxu0 %v539
        %676 = vmatprep.subr.mxu0 %v544
        %677 = vmatpush1.msra.mxu0 %v543
        %678 = vmatprep.subr.mxu0 %v548
        %679 = vmatpush1.msra.mxu0 %v547
        %680 = vmatprep.subr.mxu0 0.0
        %681 = vmatpush1.msra.mxu0 0.0
        %682 = vmatprep.subr.mxu0 0.0
        %683 = vmatpush1.msra.mxu0 0.0
        %684 = vmatprep.subr.mxu0 0.0
        %685 = vmatpush1.msra.mxu0 0.0
        %686 = vmatprep.subr.mxu0 0.0
        %687 = vmatpush1.msra.mxu0 0.0
        %688 = vmatprep.subr.mxu0 0.0
        %689 = vmatpush1.msra.mxu0 0.0
        %690 = vmatprep.subr.mxu0 0.0
        %691 = vmatpush1.msra.mxu0 0.0
        %692 = vmatprep.subr.mxu0 0.0
        %693 = vmatpush1.msra.mxu0 0.0
        %694 = vmatprep.subr.mxu0 0.0
        %695 = vmatpush1.msra.mxu0 0.0
        %696 = vmatprep.subr.mxu0 0.0
        %697 = vmatpush1.msra.mxu0 0.0
        %698 = vmatprep.subr.mxu0 0.0
        %699 = vmatpush1.msra.mxu0 0.0
        %700 = vmatprep.subr.mxu0 0.0
        %701 = vmatpush1.msra.mxu0 0.0
        %702 = vmatprep.subr.mxu0 0.0
        %703 = vmatpush1.msra.mxu0 0.0
        %704 = vmatprep.subr.mxu0 0.0
        %705 = vmatpush1.msra.mxu0 0.0
        %706 = vmatprep.subr.mxu0 0.0
        %707 = vmatpush1.msra.mxu0 0.0
        %708 = vmatprep.subr.mxu0 0.0
        %709 = vmatpush1.msra.mxu0 0.0
        %710 = vmatprep.subr.mxu0 0.0
        %711 = vmatpush1.msra.mxu0 0.0
        %712 = vmatprep.mubr.f32.mxu0 0.0
        %713 = vmatmul.mubr.f32.gmra.mrb[0].mxu0 %v469
        %v714 = vpop.f32.mrb[0].mxu0
        %v715 = vadd.f32 %v562, %v714
        %v716 = vpop.f32.mrb[0].mxu0
        %v717 = vadd.f32 %v566, %v716
        %718 = vmatprep.mubr.f32.mxu0 0.0
        %719 = vmatmul.mubr.f32.gmra.mrb[0].mxu0 %v470
        %v720 = vpop.f32.mrb[0].mxu0
        %v721 = vadd.f32 %v562, %v720
        %v722 = vpop.f32.mrb[0].mxu0
        %v723 = vadd.f32 %v566, %v722
        %724 = vdwg.mxu0
        %v725 = vld [vmem:[%s403] sm:$0xff]
        %v726 = vld [vmem:[%s403 + $0x8] sm:$0xff]
        %v727 = vld [vmem:[%s403 + $0x10] sm:$0xff]
        %v728 = vld [vmem:[%s403 + $0x18] sm:$0xff]
        %v729 = vld [vmem:[%s403 + $0x20] sm:$0xff]
        %v730 = vld [vmem:[%s403 + $0x28] sm:$0xff]
        %v731 = vld [vmem:[%s403 + $0x30] sm:$0xff]
        %v732 = vld [vmem:[%s403 + $0x38] sm:$0xff]
        %v733 = vld [vmem:[%s403 + $0x40] sm:$0xff]
        %v734 = vld [vmem:[%s403 + $0x48] sm:$0xff]
        %v735 = vld [vmem:[%s403 + $0x50] sm:$0xff]
        %v736 = vld [vmem:[%s403 + $0x58] sm:$0xff]
        %v737 = vld [vmem:[%s403 + $0x60] sm:$0xff]
        %v738 = vld [vmem:[%s403 + $0x68] sm:$0xff]
        %v739 = vld [vmem:[%s403 + $0x70] sm:$0xff]
        %v740 = vld [vmem:[%s403 + $0x78] sm:$0xff]
        %v741 = vld [vmem:[%s403 + $0x80] sm:$0xff]
        %v742 = vld [vmem:[%s403 + $0x88] sm:$0xff]
        %v743 = vld [vmem:[%s403 + $0x90] sm:$0xff]
        %v744 = vld [vmem:[%s403 + $0x98] sm:$0xff]
        %v745 = vld [vmem:[%s403 + $0xa0] sm:$0xff]
        %v746 = vld [vmem:[%s403 + $0xa8] sm:$0xff]
        %v747 = vld [vmem:[%s403 + $0xb0] sm:$0xff]
        %v748 = vld [vmem:[%s403 + $0xb8] sm:$0xff]
        %v749 = vld [vmem:[%s403 + $0xc0] sm:$0xff]
        %v750 = vld [vmem:[%s403 + $0xc8] sm:$0xff]
        %v751 = vld [vmem:[%s403 + $0xd0] sm:$0xff]
        %v752 = vld [vmem:[%s403 + $0xd8] sm:$0xff]
        %v753 = vld [vmem:[%s403 + $0xe0] sm:$0xff]
        %v754 = vld [vmem:[%s403 + $0xe8] sm:$0xff]
        %v755 = vld [vmem:[%s403 + $0xf0] sm:$0xff]
        %v756 = vld [vmem:[%s403 + $0xf8] sm:$0xff]
        %v757 = vld [vmem:[%s403 + $0x100] sm:$0xff]
        %v758 = vld [vmem:[%s403 + $0x108] sm:$0xff]
        %v759 = vld [vmem:[%s403 + $0x110] sm:$0xff]
        %v760 = vld [vmem:[%s403 + $0x118] sm:$0xff]
        %v761 = vld [vmem:[%s403 + $0x120] sm:$0xff]
        %v762 = vld [vmem:[%s403 + $0x128] sm:$0xff]
        %v763 = vld [vmem:[%s403 + $0x130] sm:$0xff]
        %v764 = vld [vmem:[%s403 + $0x138] sm:$0xff]
        %v765 = vld [vmem:[%s403 + $0x140] sm:$0xff]
        %v766 = vld [vmem:[%s403 + $0x148] sm:$0xff]
        %v767 = vld [vmem:[%s403 + $0x150] sm:$0xff]
        %v768 = vld [vmem:[%s403 + $0x158] sm:$0xff]
        %v769 = vld [vmem:[%s403 + $0x160] sm:$0xff]
        %v770 = vld [vmem:[%s403 + $0x168] sm:$0xff]
        %v771 = vld [vmem:[%s403 + $0x170] sm:$0xff]
        %v772 = vld [vmem:[%s403 + $0x178] sm:$0xff]
        %v773 = vld [vmem:[%s403 + $0x180] sm:$0xff]
        %v774 = vld [vmem:[%s403 + $0x188] sm:$0xff]
        %v775 = vld [vmem:[%s403 + $0x190] sm:$0xff]
        %v776 = vld [vmem:[%s403 + $0x198] sm:$0xff]
        %v777 = vld [vmem:[%s403 + $0x1a0] sm:$0xff]
        %v778 = vld [vmem:[%s403 + $0x1a8] sm:$0xff]
        %v779 = vld [vmem:[%s403 + $0x1b0] sm:$0xff]
        %v780 = vld [vmem:[%s403 + $0x1b8] sm:$0xff]
        %v781 = vld [vmem:[%s403 + $0x1c0] sm:$0xff]
        %v782 = vld [vmem:[%s403 + $0x1c8] sm:$0xff]
        %v783 = vld [vmem:[%s403 + $0x1d0] sm:$0xff]
        %v784 = vld [vmem:[%s403 + $0x1d8] sm:$0xff]
        %v785 = vld [vmem:[%s403 + $0x1e0] sm:$0xff]
        %v786 = vld [vmem:[%s403 + $0x1e8] sm:$0xff]
        %v787 = vld [vmem:[%s403 + $0x1f0] sm:$0xff]
        %v788 = vld [vmem:[%s403 + $0x1f8] sm:$0xff]
        %789 = vmatprep.subr.mxu0 %v726
        %790 = vmatpush1.msra.mxu0 %v725
        %791 = vmatprep.subr.mxu0 %v730
        %792 = vmatpush1.msra.mxu0 %v729
        %793 = vmatprep.subr.mxu0 %v734
        %794 = vmatpush1.msra.mxu0 %v733
        %795 = vmatprep.subr.mxu0 %v738
        %796 = vmatpush1.msra.mxu0 %v737
        %797 = vmatprep.subr.mxu0 %v742
        %798 = vmatpush1.msra.mxu0 %v741
        %799 = vmatprep.subr.mxu0 %v746
        %800 = vmatpush1.msra.mxu0 %v745
        %801 = vmatprep.subr.mxu0 %v750
        %802 = vmatpush1.msra.mxu0 %v749
        %803 = vmatprep.subr.mxu0 %v754
        %804 = vmatpush1.msra.mxu0 %v753
        %805 = vmatprep.subr.mxu0 %v758
        %806 = vmatpush1.msra.mxu0 %v757
        %807 = vmatprep.subr.mxu0 %v762
        %808 = vmatpush1.msra.mxu0 %v761
        %809 = vmatprep.subr.mxu0 %v766
        %810 = vmatpush1.msra.mxu0 %v765
        %811 = vmatprep.subr.mxu0 %v770
        %812 = vmatpush1.msra.mxu0 %v769
        %813 = vmatprep.subr.mxu0 %v774
        %814 = vmatpush1.msra.mxu0 %v773
        %815 = vmatprep.subr.mxu0 %v778
        %816 = vmatpush1.msra.mxu0 %v777
        %817 = vmatprep.subr.mxu0 %v782
        %818 = vmatpush1.msra.mxu0 %v781
        %819 = vmatprep.subr.mxu0 %v786
        %820 = vmatpush1.msra.mxu0 %v785
        %821 = vmatprep.subr.mxu0 0.0
        %822 = vmatpush1.msra.mxu0 0.0
        %823 = vmatprep.subr.mxu0 0.0
        %824 = vmatpush1.msra.mxu0 0.0
        %825 = vmatprep.subr.mxu0 0.0
        %826 = vmatpush1.msra.mxu0 0.0
        %827 = vmatprep.subr.mxu0 0.0
        %828 = vmatpush1.msra.mxu0 0.0
        %829 = vmatprep.subr.mxu0 0.0
        %830 = vmatpush1.msra.mxu0 0.0
        %831 = vmatprep.subr.mxu0 0.0
        %832 = vmatpush1.msra.mxu0 0.0
        %833 = vmatprep.subr.mxu0 0.0
        %834 = vmatpush1.msra.mxu0 0.0
        %835 = vmatprep.subr.mxu0 0.0
        %836 = vmatpush1.msra.mxu0 0.0
        %837 = vmatprep.subr.mxu0 0.0
        %838 = vmatpush1.msra.mxu0 0.0
        %839 = vmatprep.subr.mxu0 0.0
        %840 = vmatpush1.msra.mxu0 0.0
        %841 = vmatprep.subr.mxu0 0.0
        %842 = vmatpush1.msra.mxu0 0.0
        %843 = vmatprep.subr.mxu0 0.0
        %844 = vmatpush1.msra.mxu0 0.0
        %845 = vmatprep.subr.mxu0 0.0
        %846 = vmatpush1.msra.mxu0 0.0
        %847 = vmatprep.subr.mxu0 0.0
        %848 = vmatpush1.msra.mxu0 0.0
        %849 = vmatprep.subr.mxu0 0.0
        %850 = vmatpush1.msra.mxu0 0.0
        %851 = vmatprep.subr.mxu0 0.0
        %852 = vmatpush1.msra.mxu0 0.0
        %853 = vmatprep.mubr.f32.mxu0 0.0
        %854 = vmatmul.mubr.f32.gmra.mrb[0].mxu0 %v479
        %v855 = vpop.f32.mrb[0].mxu0
        %v856 = vadd.f32 0.0, %v855
        %v857 = vpop.f32.mrb[0].mxu0
        %v858 = vadd.f32 0.0, %v857
        %859 = vdwg.mxu0
        %860 = vmatprep.subr.mxu0 %v728
        %861 = vmatpush1.msra.mxu0 %v727
        %862 = vmatprep.subr.mxu0 %v732
        %863 = vmatpush1.msra.mxu0 %v731
        %864 = vmatprep.subr.mxu0 %v736
        %865 = vmatpush1.msra.mxu0 %v735
        %866 = vmatprep.subr.mxu0 %v740
        %867 = vmatpush1.msra.mxu0 %v739
        %868 = vmatprep.subr.mxu0 %v744
        %869 = vmatpush1.msra.mxu0 %v743
        %870 = vmatprep.subr.mxu0 %v748
        %871 = vmatpush1.msra.mxu0 %v747
        %872 = vmatprep.subr.mxu0 %v752
        %873 = vmatpush1.msra.mxu0 %v751
        %874 = vmatprep.subr.mxu0 %v756
        %875 = vmatpush1.msra.mxu0 %v755
        %876 = vmatprep.subr.mxu0 %v760
        %877 = vmatpush1.msra.mxu0 %v759
        %878 = vmatprep.subr.mxu0 %v764
        %879 = vmatpush1.msra.mxu0 %v763
        %880 = vmatprep.subr.mxu0 %v768
        %881 = vmatpush1.msra.mxu0 %v767
        %882 = vmatprep.subr.mxu0 %v772
        %883 = vmatpush1.msra.mxu0 %v771
        %884 = vmatprep.subr.mxu0 %v776
        %885 = vmatpush1.msra.mxu0 %v775
        %886 = vmatprep.subr.mxu0 %v780
        %887 = vmatpush1.msra.mxu0 %v779
        %888 = vmatprep.subr.mxu0 %v784
        %889 = vmatpush1.msra.mxu0 %v783
        %890 = vmatprep.subr.mxu0 %v788
        %891 = vmatpush1.msra.mxu0 %v787
        %892 = vmatprep.subr.mxu0 0.0
        %893 = vmatpush1.msra.mxu0 0.0
        %894 = vmatprep.subr.mxu0 0.0
        %895 = vmatpush1.msra.mxu0 0.0
        %896 = vmatprep.subr.mxu0 0.0
        %897 = vmatpush1.msra.mxu0 0.0
        %898 = vmatprep.subr.mxu0 0.0
        %899 = vmatpush1.msra.mxu0 0.0
        %900 = vmatprep.subr.mxu0 0.0
        %901 = vmatpush1.msra.mxu0 0.0
        %902 = vmatprep.subr.mxu0 0.0
        %903 = vmatpush1.msra.mxu0 0.0
        %904 = vmatprep.subr.mxu0 0.0
        %905 = vmatpush1.msra.mxu0 0.0
        %906 = vmatprep.subr.mxu0 0.0
        %907 = vmatpush1.msra.mxu0 0.0
        %908 = vmatprep.subr.mxu0 0.0
        %909 = vmatpush1.msra.mxu0 0.0
        %910 = vmatprep.subr.mxu0 0.0
        %911 = vmatpush1.msra.mxu0 0.0
        %912 = vmatprep.subr.mxu0 0.0
        %913 = vmatpush1.msra.mxu0 0.0
        %914 = vmatprep.subr.mxu0 0.0
        %915 = vmatpush1.msra.mxu0 0.0
        %916 = vmatprep.subr.mxu0 0.0
        %917 = vmatpush1.msra.mxu0 0.0
        %918 = vmatprep.subr.mxu0 0.0
        %919 = vmatpush1.msra.mxu0 0.0
        %920 = vmatprep.subr.mxu0 0.0
        %921 = vmatpush1.msra.mxu0 0.0
        %922 = vmatprep.subr.mxu0 0.0
        %923 = vmatpush1.msra.mxu0 0.0
        %924 = vmatprep.mubr.f32.mxu0 0.0
        %925 = vmatmul.mubr.f32.gmra.mrb[0].mxu0 %v479
        %v926 = vpop.f32.mrb[0].mxu0
        %v927 = vadd.f32 0.0, %v926
        %v928 = vpop.f32.mrb[0].mxu0
        %v929 = vadd.f32 0.0, %v928
        %930 = vdwg.mxu0
        %v931 = vadd.f32 %v638, %v856
        %v932 = vadd.f32 %v640, %v858
        %v933 = vadd.f32 %v715, %v927
        %v934 = vadd.f32 %v717, %v929
        %v935 = vxor.u32 %v931, 2147483648
        %v936 = vmul.f32 %v935, 1.442695
        %v937 = vpow.pop %v936
        %v938 = vadd.f32 %v937, 1.0
        %v939 = vrcp.pop %v938
        %v940 = vmul.f32 1.0, %v939
        %v941 = vxor.u32 %v932, 2147483648
        %v942 = vmul.f32 %v941, 1.442695
        %v943 = vpow.pop %v942
        %v944 = vadd.f32 %v943, 1.0
        %v945 = vrcp.pop %v944
        %v946 = vmul.f32 1.0, %v945
        %v947 = vtanh.pop %v933
        %v948 = vxor.u32 %v934, 2147483648
        %v949 = vmul.f32 %v948, 1.442695
        %v950 = vpow.pop %v949
        %v951 = vadd.f32 %v950, 1.0
        %v952 = vrcp.pop %v951
        %v953 = vmul.f32 1.0, %v952
        %v954 = vmul.f32 %v946, %v484
        %v955 = vmul.f32 %v940, %v947
        %v956 = vadd.f32 %v954, %v955
        %v957 = vtanh.pop %v956
        %v958 = vmul.f32 %v953, %v957
        %959 = vmatprep.subr.mxu0 %v726
        %960 = vmatpush1.msra.mxu0 %v725
        %961 = vmatprep.subr.mxu0 %v730
        %962 = vmatpush1.msra.mxu0 %v729
        %963 = vmatprep.subr.mxu0 %v734
        %964 = vmatpush1.msra.mxu0 %v733
        %965 = vmatprep.subr.mxu0 %v738
        %966 = vmatpush1.msra.mxu0 %v737
        %967 = vmatprep.subr.mxu0 %v742
        %968 = vmatpush1.msra.mxu0 %v741
        %969 = vmatprep.subr.mxu0 %v746
        %970 = vmatpush1.msra.mxu0 %v745
        %971 = vmatprep.subr.mxu0 %v750
        %972 = vmatpush1.msra.mxu0 %v749
        %973 = vmatprep.subr.mxu0 %v754
        %974 = vmatpush1.msra.mxu0 %v753
        %975 = vmatprep.subr.mxu0 %v758
        %976 = vmatpush1.msra.mxu0 %v757
        %977 = vmatprep.subr.mxu0 %v762
        %978 = vmatpush1.msra.mxu0 %v761
        %979 = vmatprep.subr.mxu0 %v766
        %980 = vmatpush1.msra.mxu0 %v765
        %981 = vmatprep.subr.mxu0 %v770
        %982 = vmatpush1.msra.mxu0 %v769
        %983 = vmatprep.subr.mxu0 %v774
        %984 = vmatpush1.msra.mxu0 %v773
        %985 = vmatprep.subr.mxu0 %v778
        %986 = vmatpush1.msra.mxu0 %v777
        %987 = vmatprep.subr.mxu0 %v782
        %988 = vmatpush1.msra.mxu0 %v781
        %989 = vmatprep.subr.mxu0 %v786
        %990 = vmatpush1.msra.mxu0 %v785
        %991 = vmatprep.subr.mxu0 0.0
        %992 = vmatpush1.msra.mxu0 0.0
        %993 = vmatprep.subr.mxu0 0.0
        %994 = vmatpush1.msra.mxu0 0.0
        %995 = vmatprep.subr.mxu0 0.0
        %996 = vmatpush1.msra.mxu0 0.0
        %997 = vmatprep.subr.mxu0 0.0
        %998 = vmatpush1.msra.mxu0 0.0
        %999 = vmatprep.subr.mxu0 0.0
        %1000 = vmatpush1.msra.mxu0 0.0
        %1001 = vmatprep.subr.mxu0 0.0
        %1002 = vmatpush1.msra.mxu0 0.0
        %1003 = vmatprep.subr.mxu0 0.0
        %1004 = vmatpush1.msra.mxu0 0.0
        %1005 = vmatprep.subr.mxu0 0.0
        %1006 = vmatpush1.msra.mxu0 0.0
        %1007 = vmatprep.subr.mxu0 0.0
        %1008 = vmatpush1.msra.mxu0 0.0
        %1009 = vmatprep.subr.mxu0 0.0
        %1010 = vmatpush1.msra.mxu0 0.0
        %1011 = vmatprep.subr.mxu0 0.0
        %1012 = vmatpush1.msra.mxu0 0.0
        %1013 = vmatprep.subr.mxu0 0.0
        %1014 = vmatpush1.msra.mxu0 0.0
        %1015 = vmatprep.subr.mxu0 0.0
        %1016 = vmatpush1.msra.mxu0 0.0
        %1017 = vmatprep.subr.mxu0 0.0
        %1018 = vmatpush1.msra.mxu0 0.0
        %1019 = vmatprep.subr.mxu0 0.0
        %1020 = vmatpush1.msra.mxu0 0.0
        %1021 = vmatprep.subr.mxu0 0.0
        %1022 = vmatpush1.msra.mxu0 0.0
        %1023 = vmatprep.mubr.f32.mxu0 0.0
        %1024 = vmatmul.mubr.f32.gmra.mrb[0].mxu0 %v958
        %v1025 = vpop.f32.mrb[0].mxu0
        %v1026 = vadd.f32 0.0, %v1025
        %v1027 = vpop.f32.mrb[0].mxu0
        %v1028 = vadd.f32 0.0, %v1027
        %1029 = vdwg.mxu0
        %1030 = vmatprep.subr.mxu0 %v728
        %1031 = vmatpush1.msra.mxu0 %v727
        %1032 = vmatprep.subr.mxu0 %v732
        %1033 = vmatpush1.msra.mxu0 %v731
        %1034 = vmatprep.subr.mxu0 %v736
        %1035 = vmatpush1.msra.mxu0 %v735
        %1036 = vmatprep.subr.mxu0 %v740
        %1037 = vmatpush1.msra.mxu0 %v739
        %1038 = vmatprep.subr.mxu0 %v744
        %1039 = vmatpush1.msra.mxu0 %v743
        %1040 = vmatprep.subr.mxu0 %v748
        %1041 = vmatpush1.msra.mxu0 %v747
        %1042 = vmatprep.subr.mxu0 %v752
        %1043 = vmatpush1.msra.mxu0 %v751
        %1044 = vmatprep.subr.mxu0 %v756
        %1045 = vmatpush1.msra.mxu0 %v755
        %1046 = vmatprep.subr.mxu0 %v760
        %1047 = vmatpush1.msra.mxu0 %v759
        %1048 = vmatprep.subr.mxu0 %v764
        %1049 = vmatpush1.msra.mxu0 %v763
        %1050 = vmatprep.subr.mxu0 %v768
        %1051 = vmatpush1.msra.mxu0 %v767
        %1052 = vmatprep.subr.mxu0 %v772
        %1053 = vmatpush1.msra.mxu0 %v771
        %1054 = vmatprep.subr.mxu0 %v776
        %1055 = vmatpush1.msra.mxu0 %v775
        %1056 = vmatprep.subr.mxu0 %v780
        %1057 = vmatpush1.msra.mxu0 %v779
        %1058 = vmatprep.subr.mxu0 %v784
        %1059 = vmatpush1.msra.mxu0 %v783
        %1060 = vmatprep.subr.mxu0 %v788
        %1061 = vmatpush1.msra.mxu0 %v787
        %1062 = vmatprep.subr.mxu0 0.0
        %1063 = vmatpush1.msra.mxu0 0.0
        %1064 = vmatprep.subr.mxu0 0.0
        %1065 = vmatpush1.msra.mxu0 0.0
        %1066 = vmatprep.subr.mxu0 0.0
        %1067 = vmatpush1.msra.mxu0 0.0
        %1068 = vmatprep.subr.mxu0 0.0
        %1069 = vmatpush1.msra.mxu0 0.0
        %1070 = vmatprep.subr.mxu0 0.0
        %1071 = vmatpush1.msra.mxu0 0.0
        %1072 = vmatprep.subr.mxu0 0.0
        %1073 = vmatpush1.msra.mxu0 0.0
        %1074 = vmatprep.subr.mxu0 0.0
        %1075 = vmatpush1.msra.mxu0 0.0
        %1076 = vmatprep.subr.mxu0 0.0
        %1077 = vmatpush1.msra.mxu0 0.0
        %1078 = vmatprep.subr.mxu0 0.0
        %1079 = vmatpush1.msra.mxu0 0.0
        %1080 = vmatprep.subr.mxu0 0.0
        %1081 = vmatpush1.msra.mxu0 0.0
        %1082 = vmatprep.subr.mxu0 0.0
        %1083 = vmatpush1.msra.mxu0 0.0
        %1084 = vmatprep.subr.mxu0 0.0
        %1085 = vmatpush1.msra.mxu0 0.0
        %1086 = vmatprep.subr.mxu0 0.0
        %1087 = vmatpush1.msra.mxu0 0.0
        %1088 = vmatprep.subr.mxu0 0.0
        %1089 = vmatpush1.msra.mxu0 0.0
        %1090 = vmatprep.subr.mxu0 0.0
        %1091 = vmatpush1.msra.mxu0 0.0
        %1092 = vmatprep.subr.mxu0 0.0
        %1093 = vmatpush1.msra.mxu0 0.0
        %1094 = vmatprep.mubr.f32.mxu0 0.0
        %1095 = vmatmul.mubr.f32.gmra.mrb[0].mxu0 %v958
        %v1096 = vpop.f32.mrb[0].mxu0
        %v1097 = vadd.f32 0.0, %v1096
        %v1098 = vpop.f32.mrb[0].mxu0
        %v1099 = vadd.f32 0.0, %v1098
        %1100 = vdwg.mxu0
        %v1105 = vrot.slane %v1026, 6
        %v1106 = vrot.slane %v1028, 6
        %v1107 = vrot.slane %v1097, 6
        %v1108 = vrot.slane %v1099, 6
        %v1113 = vadd.f32 %v638, %v1105
        %v1114 = vadd.f32 %v640, %v1106
        %v1115 = vadd.f32 %v715, %v1107
        %v1116 = vadd.f32 %v717, %v1108
        %v1117 = vxor.u32 %v1113, 2147483648
        %v1118 = vmul.f32 %v1117, 1.442695
        %v1119 = vpow.pop %v1118
        %v1120 = vadd.f32 %v1119, 1.0
        %v1121 = vrcp.pop %v1120
        %v1122 = vmul.f32 1.0, %v1121
        %v1123 = vxor.u32 %v1114, 2147483648
        %v1124 = vmul.f32 %v1123, 1.442695
        %v1125 = vpow.pop %v1124
        %v1126 = vadd.f32 %v1125, 1.0
        %v1127 = vrcp.pop %v1126
        %v1128 = vmul.f32 1.0, %v1127
        %v1129 = vtanh.pop %v1115
        %v1130 = vxor.u32 %v1116, 2147483648
        %v1131 = vmul.f32 %v1130, 1.442695
        %v1132 = vpow.pop %v1131
        %v1133 = vadd.f32 %v1132, 1.0
        %v1134 = vrcp.pop %v1133
        %v1135 = vmul.f32 1.0, %v1134
        %v1137 = vrot.slane %v956, 6
        %v1139 = vmul.f32 %v1128, %v1137
        %v1140 = vmul.f32 %v1122, %v1129
        %v1141 = vadd.f32 %v1139, %v1140
        %v1142 = vtanh.pop %v1141
        %v1143 = vmul.f32 %v1135, %v1142
        %v1145 = vrot.slane %v1143, 2
        %1147 = vmatprep.subr.mxu0 %v726
        %1148 = vmatpush1.msra.mxu0 %v725
        %1149 = vmatprep.subr.mxu0 %v730
        %1150 = vmatpush1.msra.mxu0 %v729
        %1151 = vmatprep.subr.mxu0 %v734
        %1152 = vmatpush1.msra.mxu0 %v733
        %1153 = vmatprep.subr.mxu0 %v738
        %1154 = vmatpush1.msra.mxu0 %v737
        %1155 = vmatprep.subr.mxu0 %v742
        %1156 = vmatpush1.msra.mxu0 %v741
        %1157 = vmatprep.subr.mxu0 %v746
        %1158 = vmatpush1.msra.mxu0 %v745
        %1159 = vmatprep.subr.mxu0 %v750
        %1160 = vmatpush1.msra.mxu0 %v749
        %1161 = vmatprep.subr.mxu0 %v754
        %1162 = vmatpush1.msra.mxu0 %v753
        %1163 = vmatprep.subr.mxu0 %v758
        %1164 = vmatpush1.msra.mxu0 %v757
        %1165 = vmatprep.subr.mxu0 %v762
        %1166 = vmatpush1.msra.mxu0 %v761
        %1167 = vmatprep.subr.mxu0 %v766
        %1168 = vmatpush1.msra.mxu0 %v765
        %1169 = vmatprep.subr.mxu0 %v770
        %1170 = vmatpush1.msra.mxu0 %v769
        %1171 = vmatprep.subr.mxu0 %v774
        %1172 = vmatpush1.msra.mxu0 %v773
        %1173 = vmatprep.subr.mxu0 %v778
        %1174 = vmatpush1.msra.mxu0 %v777
        %1175 = vmatprep.subr.mxu0 %v782
        %1176 = vmatpush1.msra.mxu0 %v781
        %1177 = vmatprep.subr.mxu0 %v786
        %1178 = vmatpush1.msra.mxu0 %v785
        %1179 = vmatprep.subr.mxu0 0.0
        %1180 = vmatpush1.msra.mxu0 0.0
        %1181 = vmatprep.subr.mxu0 0.0
        %1182 = vmatpush1.msra.mxu0 0.0
        %1183 = vmatprep.subr.mxu0 0.0
        %1184 = vmatpush1.msra.mxu0 0.0
        %1185 = vmatprep.subr.mxu0 0.0
        %1186 = vmatpush1.msra.mxu0 0.0
        %1187 = vmatprep.subr.mxu0 0.0
        %1188 = vmatpush1.msra.mxu0 0.0
        %1189 = vmatprep.subr.mxu0 0.0
        %1190 = vmatpush1.msra.mxu0 0.0
        %1191 = vmatprep.subr.mxu0 0.0
        %1192 = vmatpush1.msra.mxu0 0.0
        %1193 = vmatprep.subr.mxu0 0.0
        %1194 = vmatpush1.msra.mxu0 0.0
        %1195 = vmatprep.subr.mxu0 0.0
        %1196 = vmatpush1.msra.mxu0 0.0
        %1197 = vmatprep.subr.mxu0 0.0
        %1198 = vmatpush1.msra.mxu0 0.0
        %1199 = vmatprep.subr.mxu0 0.0
        %1200 = vmatpush1.msra.mxu0 0.0
        %1201 = vmatprep.subr.mxu0 0.0
        %1202 = vmatpush1.msra.mxu0 0.0
        %1203 = vmatprep.subr.mxu0 0.0
        %1204 = vmatpush1.msra.mxu0 0.0
        %1205 = vmatprep.subr.mxu0 0.0
        %1206 = vmatpush1.msra.mxu0 0.0
        %1207 = vmatprep.subr.mxu0 0.0
        %1208 = vmatpush1.msra.mxu0 0.0
        %1209 = vmatprep.subr.mxu0 0.0
        %1210 = vmatpush1.msra.mxu0 0.0
        %1211 = vmatprep.mubr.f32.mxu0 0.0
        %1212 = vmatmul.mubr.f32.gmra.mrb[0].mxu0 %v1145
        %v1213 = vpop.f32.mrb[0].mxu0
        %v1214 = vadd.f32 0.0, %v1213
        %v1215 = vpop.f32.mrb[0].mxu0
        %v1216 = vadd.f32 0.0, %v1215
        %1217 = vdwg.mxu0
        %1218 = vmatprep.subr.mxu0 %v728
        %1219 = vmatpush1.msra.mxu0 %v727
        %1220 = vmatprep.subr.mxu0 %v732
        %1221 = vmatpush1.msra.mxu0 %v731
        %1222 = vmatprep.subr.mxu0 %v736
        %1223 = vmatpush1.msra.mxu0 %v735
        %1224 = vmatprep.subr.mxu0 %v740
        %1225 = vmatpush1.msra.mxu0 %v739
        %1226 = vmatprep.subr.mxu0 %v744
        %1227 = vmatpush1.msra.mxu0 %v743
        %1228 = vmatprep.subr.mxu0 %v748
        %1229 = vmatpush1.msra.mxu0 %v747
        %1230 = vmatprep.subr.mxu0 %v752
        %1231 = vmatpush1.msra.mxu0 %v751
        %1232 = vmatprep.subr.mxu0 %v756
        %1233 = vmatpush1.msra.mxu0 %v755
        %1234 = vmatprep.subr.mxu0 %v760
        %1235 = vmatpush1.msra.mxu0 %v759
        %1236 = vmatprep.subr.mxu0 %v764
        %1237 = vmatpush1.msra.mxu0 %v763
        %1238 = vmatprep.subr.mxu0 %v768
        %1239 = vmatpush1.msra.mxu0 %v767
        %1240 = vmatprep.subr.mxu0 %v772
        %1241 = vmatpush1.msra.mxu0 %v771
        %1242 = vmatprep.subr.mxu0 %v776
        %1243 = vmatpush1.msra.mxu0 %v775
        %1244 = vmatprep.subr.mxu0 %v780
        %1245 = vmatpush1.msra.mxu0 %v779
        %1246 = vmatprep.subr.mxu0 %v784
        %1247 = vmatpush1.msra.mxu0 %v783
        %1248 = vmatprep.subr.mxu0 %v788
        %1249 = vmatpush1.msra.mxu0 %v787
        %1250 = vmatprep.subr.mxu0 0.0
        %1251 = vmatpush1.msra.mxu0 0.0
        %1252 = vmatprep.subr.mxu0 0.0
        %1253 = vmatpush1.msra.mxu0 0.0
        %1254 = vmatprep.subr.mxu0 0.0
        %1255 = vmatpush1.msra.mxu0 0.0
        %1256 = vmatprep.subr.mxu0 0.0
        %1257 = vmatpush1.msra.mxu0 0.0
        %1258 = vmatprep.subr.mxu0 0.0
        %1259 = vmatpush1.msra.mxu0 0.0
        %1260 = vmatprep.subr.mxu0 0.0
        %1261 = vmatpush1.msra.mxu0 0.0
        %1262 = vmatprep.subr.mxu0 0.0
        %1263 = vmatpush1.msra.mxu0 0.0
        %1264 = vmatprep.subr.mxu0 0.0
        %1265 = vmatpush1.msra.mxu0 0.0
        %1266 = vmatprep.subr.mxu0 0.0
        %1267 = vmatpush1.msra.mxu0 0.0
        %1268 = vmatprep.subr.mxu0 0.0
        %1269 = vmatpush1.msra.mxu0 0.0
        %1270 = vmatprep.subr.mxu0 0.0
        %1271 = vmatpush1.msra.mxu0 0.0
        %1272 = vmatprep.subr.mxu0 0.0
        %1273 = vmatpush1.msra.mxu0 0.0
        %1274 = vmatprep.subr.mxu0 0.0
        %1275 = vmatpush1.msra.mxu0 0.0
        %1276 = vmatprep.subr.mxu0 0.0
        %1277 = vmatpush1.msra.mxu0 0.0
        %1278 = vmatprep.subr.mxu0 0.0
        %1279 = vmatpush1.msra.mxu0 0.0
        %1280 = vmatprep.subr.mxu0 0.0
        %1281 = vmatpush1.msra.mxu0 0.0
        %1282 = vmatprep.mubr.f32.mxu0 0.0
        %1283 = vmatmul.mubr.f32.gmra.mrb[0].mxu0 %v1145
        %v1284 = vpop.f32.mrb[0].mxu0
        %v1285 = vadd.f32 0.0, %v1284
        %v1286 = vpop.f32.mrb[0].mxu0
        %v1287 = vadd.f32 0.0, %v1286
        %1288 = vdwg.mxu0
        %v1293 = vrot.slane %v1214, 4
        %v1294 = vrot.slane %v1216, 4
        %v1295 = vrot.slane %v1285, 4
        %v1296 = vrot.slane %v1287, 4
        %v1301 = vadd.f32 %v638, %v1293
        %v1302 = vadd.f32 %v640, %v1294
        %v1303 = vadd.f32 %v715, %v1295
        %v1304 = vadd.f32 %v717, %v1296
        %v1305 = vxor.u32 %v1301, 2147483648
        %v1306 = vmul.f32 %v1305, 1.442695
        %v1307 = vpow.pop %v1306
        %v1308 = vadd.f32 %v1307, 1.0
        %v1309 = vrcp.pop %v1308
        %v1310 = vmul.f32 1.0, %v1309
        %v1311 = vxor.u32 %v1302, 2147483648
        %v1312 = vmul.f32 %v1311, 1.442695
        %v1313 = vpow.pop %v1312
        %v1314 = vadd.f32 %v1313, 1.0
        %v1315 = vrcp.pop %v1314
        %v1316 = vmul.f32 1.0, %v1315
        %v1317 = vtanh.pop %v1303
        %v1318 = vxor.u32 %v1304, 2147483648
        %v1319 = vmul.f32 %v1318, 1.442695
        %v1320 = vpow.pop %v1319
        %v1321 = vadd.f32 %v1320, 1.0
        %v1322 = vrcp.pop %v1321
        %v1323 = vmul.f32 1.0, %v1322
        %v1325 = vrot.slane %v1141, 6
        %v1327 = vmul.f32 %v1316, %v1325
        %v1328 = vmul.f32 %v1310, %v1317
        %v1329 = vadd.f32 %v1327, %v1328
        %v1330 = vtanh.pop %v1329
        %v1331 = vmul.f32 %v1323, %v1330
        %v1333 = vrot.slane %v1331, 4
        %1335 = vmatprep.subr.mxu0 %v726
        %1336 = vmatpush1.msra.mxu0 %v725
        %1337 = vmatprep.subr.mxu0 %v730
        %1338 = vmatpush1.msra.mxu0 %v729
        %1339 = vmatprep.subr.mxu0 %v734
        %1340 = vmatpush1.msra.mxu0 %v733
        %1341 = vmatprep.subr.mxu0 %v738
        %1342 = vmatpush1.msra.mxu0 %v737
        %1343 = vmatprep.subr.mxu0 %v742
        %1344 = vmatpush1.msra.mxu0 %v741
        %1345 = vmatprep.subr.mxu0 %v746
        %1346 = vmatpush1.msra.mxu0 %v745
        %1347 = vmatprep.subr.mxu0 %v750
        %1348 = vmatpush1.msra.mxu0 %v749
        %1349 = vmatprep.subr.mxu0 %v754
        %1350 = vmatpush1.msra.mxu0 %v753
        %1351 = vmatprep.subr.mxu0 %v758
        %1352 = vmatpush1.msra.mxu0 %v757
        %1353 = vmatprep.subr.mxu0 %v762
        %1354 = vmatpush1.msra.mxu0 %v761
        %1355 = vmatprep.subr.mxu0 %v766
        %1356 = vmatpush1.msra.mxu0 %v765
        %1357 = vmatprep.subr.mxu0 %v770
        %1358 = vmatpush1.msra.mxu0 %v769
        %1359 = vmatprep.subr.mxu0 %v774
        %1360 = vmatpush1.msra.mxu0 %v773
        %1361 = vmatprep.subr.mxu0 %v778
        %1362 = vmatpush1.msra.mxu0 %v777
        %1363 = vmatprep.subr.mxu0 %v782
        %1364 = vmatpush1.msra.mxu0 %v781
        %1365 = vmatprep.subr.mxu0 %v786
        %1366 = vmatpush1.msra.mxu0 %v785
        %1367 = vmatprep.subr.mxu0 0.0
        %1368 = vmatpush1.msra.mxu0 0.0
        %1369 = vmatprep.subr.mxu0 0.0
        %1370 = vmatpush1.msra.mxu0 0.0
        %1371 = vmatprep.subr.mxu0 0.0
        %1372 = vmatpush1.msra.mxu0 0.0
        %1373 = vmatprep.subr.mxu0 0.0
        %1374 = vmatpush1.msra.mxu0 0.0
        %1375 = vmatprep.subr.mxu0 0.0
        %1376 = vmatpush1.msra.mxu0 0.0
        %1377 = vmatprep.subr.mxu0 0.0
        %1378 = vmatpush1.msra.mxu0 0.0
        %1379 = vmatprep.subr.mxu0 0.0
        %1380 = vmatpush1.msra.mxu0 0.0
        %1381 = vmatprep.subr.mxu0 0.0
        %1382 = vmatpush1.msra.mxu0 0.0
        %1383 = vmatprep.subr.mxu0 0.0
        %1384 = vmatpush1.msra.mxu0 0.0
        %1385 = vmatprep.subr.mxu0 0.0
        %1386 = vmatpush1.msra.mxu0 0.0
        %1387 = vmatprep.subr.mxu0 0.0
        %1388 = vmatpush1.msra.mxu0 0.0
        %1389 = vmatprep.subr.mxu0 0.0
        %1390 = vmatpush1.msra.mxu0 0.0
        %1391 = vmatprep.subr.mxu0 0.0
        %1392 = vmatpush1.msra.mxu0 0.0
        %1393 = vmatprep.subr.mxu0 0.0
        %1394 = vmatpush1.msra.mxu0 0.0
        %1395 = vmatprep.subr.mxu0 0.0
        %1396 = vmatpush1.msra.mxu0 0.0
        %1397 = vmatprep.subr.mxu0 0.0
        %1398 = vmatpush1.msra.mxu0 0.0
        %1399 = vmatprep.mubr.f32.mxu0 0.0
        %1400 = vmatmul.mubr.f32.gmra.mrb[0].mxu0 %v1333
        %v1401 = vpop.f32.mrb[0].mxu0
        %v1402 = vadd.f32 0.0, %v1401
        %v1403 = vpop.f32.mrb[0].mxu0
        %v1404 = vadd.f32 0.0, %v1403
        %1405 = vdwg.mxu0
        %1406 = vmatprep.subr.mxu0 %v728
        %1407 = vmatpush1.msra.mxu0 %v727
        %1408 = vmatprep.subr.mxu0 %v732
        %1409 = vmatpush1.msra.mxu0 %v731
        %1410 = vmatprep.subr.mxu0 %v736
        %1411 = vmatpush1.msra.mxu0 %v735
        %1412 = vmatprep.subr.mxu0 %v740
        %1413 = vmatpush1.msra.mxu0 %v739
        %1414 = vmatprep.subr.mxu0 %v744
        %1415 = vmatpush1.msra.mxu0 %v743
        %1416 = vmatprep.subr.mxu0 %v748
        %1417 = vmatpush1.msra.mxu0 %v747
        %1418 = vmatprep.subr.mxu0 %v752
        %1419 = vmatpush1.msra.mxu0 %v751
        %1420 = vmatprep.subr.mxu0 %v756
        %1421 = vmatpush1.msra.mxu0 %v755
        %1422 = vmatprep.subr.mxu0 %v760
        %1423 = vmatpush1.msra.mxu0 %v759
        %1424 = vmatprep.subr.mxu0 %v764
        %1425 = vmatpush1.msra.mxu0 %v763
        %1426 = vmatprep.subr.mxu0 %v768
        %1427 = vmatpush1.msra.mxu0 %v767
        %1428 = vmatprep.subr.mxu0 %v772
        %1429 = vmatpush1.msra.mxu0 %v771
        %1430 = vmatprep.subr.mxu0 %v776
        %1431 = vmatpush1.msra.mxu0 %v775
        %1432 = vmatprep.subr.mxu0 %v780
        %1433 = vmatpush1.msra.mxu0 %v779
        %1434 = vmatprep.subr.mxu0 %v784
        %1435 = vmatpush1.msra.mxu0 %v783
        %1436 = vmatprep.subr.mxu0 %v788
        %1437 = vmatpush1.msra.mxu0 %v787
        %1438 = vmatprep.subr.mxu0 0.0
        %1439 = vmatpush1.msra.mxu0 0.0
        %1440 = vmatprep.subr.mxu0 0.0
        %1441 = vmatpush1.msra.mxu0 0.0
        %1442 = vmatprep.subr.mxu0 0.0
        %1443 = vmatpush1.msra.mxu0 0.0
        %1444 = vmatprep.subr.mxu0 0.0
        %1445 = vmatpush1.msra.mxu0 0.0
        %1446 = vmatprep.subr.mxu0 0.0
        %1447 = vmatpush1.msra.mxu0 0.0
        %1448 = vmatprep.subr.mxu0 0.0
        %1449 = vmatpush1.msra.mxu0 0.0
        %1450 = vmatprep.subr.mxu0 0.0
        %1451 = vmatpush1.msra.mxu0 0.0
        %1452 = vmatprep.subr.mxu0 0.0
        %1453 = vmatpush1.msra.mxu0 0.0
        %1454 = vmatprep.subr.mxu0 0.0
        %1455 = vmatpush1.msra.mxu0 0.0
        %1456 = vmatprep.subr.mxu0 0.0
        %1457 = vmatpush1.msra.mxu0 0.0
        %1458 = vmatprep.subr.mxu0 0.0
        %1459 = vmatpush1.msra.mxu0 0.0
        %1460 = vmatprep.subr.mxu0 0.0
        %1461 = vmatpush1.msra.mxu0 0.0
        %1462 = vmatprep.subr.mxu0 0.0
        %1463 = vmatpush1.msra.mxu0 0.0
        %1464 = vmatprep.subr.mxu0 0.0
        %1465 = vmatpush1.msra.mxu0 0.0
        %1466 = vmatprep.subr.mxu0 0.0
        %1467 = vmatpush1.msra.mxu0 0.0
        %1468 = vmatprep.subr.mxu0 0.0
        %1469 = vmatpush1.msra.mxu0 0.0
        %1470 = vmatprep.mubr.f32.mxu0 0.0
        %1471 = vmatmul.mubr.f32.gmra.mrb[0].mxu0 %v1333
        %v1472 = vpop.f32.mrb[0].mxu0
        %v1473 = vadd.f32 0.0, %v1472
        %v1474 = vpop.f32.mrb[0].mxu0
        %v1475 = vadd.f32 0.0, %v1474
        %1476 = vdwg.mxu0
        %v1481 = vrot.slane %v1402, 2
        %v1482 = vrot.slane %v1404, 2
        %v1483 = vrot.slane %v1473, 2
        %v1484 = vrot.slane %v1475, 2
        %v1489 = vadd.f32 %v638, %v1481
        %v1490 = vadd.f32 %v640, %v1482
        %v1491 = vadd.f32 %v715, %v1483
        %v1492 = vadd.f32 %v717, %v1484
        %v1493 = vxor.u32 %v1489, 2147483648
        %v1494 = vmul.f32 %v1493, 1.442695
        %v1495 = vpow.pop %v1494
        %v1496 = vadd.f32 %v1495, 1.0
        %v1497 = vrcp.pop %v1496
        %v1498 = vmul.f32 1.0, %v1497
        %v1499 = vxor.u32 %v1490, 2147483648
        %v1500 = vmul.f32 %v1499, 1.442695
        %v1501 = vpow.pop %v1500
        %v1502 = vadd.f32 %v1501, 1.0
        %v1503 = vrcp.pop %v1502
        %v1504 = vmul.f32 1.0, %v1503
        %v1505 = vtanh.pop %v1491
        %v1506 = vxor.u32 %v1492, 2147483648
        %v1507 = vmul.f32 %v1506, 1.442695
        %v1508 = vpow.pop %v1507
        %v1509 = vadd.f32 %v1508, 1.0
        %v1510 = vrcp.pop %v1509
        %v1511 = vmul.f32 1.0, %v1510
        %v1513 = vrot.slane %v1329, 6
        %v1515 = vmul.f32 %v1504, %v1513
        %v1516 = vmul.f32 %v1498, %v1505
        %v1517 = vadd.f32 %v1515, %v1516
        %v1518 = vtanh.pop %v1517
        %v1519 = vmul.f32 %v1511, %v1518
        %v1521 = vrot.slane %v1519, 6
        %1523 = vmatprep.subr.mxu0 %v726
        %1524 = vmatpush1.msra.mxu0 %v725
        %1525 = vmatprep.subr.mxu0 %v730
        %1526 = vmatpush1.msra.mxu0 %v729
        %1527 = vmatprep.subr.mxu0 %v734
        %1528 = vmatpush1.msra.mxu0 %v733
        %1529 = vmatprep.subr.mxu0 %v738
        %1530 = vmatpush1.msra.mxu0 %v737
        %1531 = vmatprep.subr.mxu0 %v742
        %1532 = vmatpush1.msra.mxu0 %v741
        %1533 = vmatprep.subr.mxu0 %v746
        %1534 = vmatpush1.msra.mxu0 %v745
        %1535 = vmatprep.subr.mxu0 %v750
        %1536 = vmatpush1.msra.mxu0 %v749
        %1537 = vmatprep.subr.mxu0 %v754
        %1538 = vmatpush1.msra.mxu0 %v753
        %1539 = vmatprep.subr.mxu0 %v758
        %1540 = vmatpush1.msra.mxu0 %v757
        %1541 = vmatprep.subr.mxu0 %v762
        %1542 = vmatpush1.msra.mxu0 %v761
        %1543 = vmatprep.subr.mxu0 %v766
        %1544 = vmatpush1.msra.mxu0 %v765
        %1545 = vmatprep.subr.mxu0 %v770
        %1546 = vmatpush1.msra.mxu0 %v769
        %1547 = vmatprep.subr.mxu0 %v774
        %1548 = vmatpush1.msra.mxu0 %v773
        %1549 = vmatprep.subr.mxu0 %v778
        %1550 = vmatpush1.msra.mxu0 %v777
        %1551 = vmatprep.subr.mxu0 %v782
        %1552 = vmatpush1.msra.mxu0 %v781
        %1553 = vmatprep.subr.mxu0 %v786
        %1554 = vmatpush1.msra.mxu0 %v785
        %1555 = vmatprep.subr.mxu0 0.0
        %1556 = vmatpush1.msra.mxu0 0.0
        %1557 = vmatprep.subr.mxu0 0.0
        %1558 = vmatpush1.msra.mxu0 0.0
        %1559 = vmatprep.subr.mxu0 0.0
        %1560 = vmatpush1.msra.mxu0 0.0
        %1561 = vmatprep.subr.mxu0 0.0
        %1562 = vmatpush1.msra.mxu0 0.0
        %1563 = vmatprep.subr.mxu0 0.0
        %1564 = vmatpush1.msra.mxu0 0.0
        %1565 = vmatprep.subr.mxu0 0.0
        %1566 = vmatpush1.msra.mxu0 0.0
        %1567 = vmatprep.subr.mxu0 0.0
        %1568 = vmatpush1.msra.mxu0 0.0
        %1569 = vmatprep.subr.mxu0 0.0
        %1570 = vmatpush1.msra.mxu0 0.0
        %1571 = vmatprep.subr.mxu0 0.0
        %1572 = vmatpush1.msra.mxu0 0.0
        %1573 = vmatprep.subr.mxu0 0.0
        %1574 = vmatpush1.msra.mxu0 0.0
        %1575 = vmatprep.subr.mxu0 0.0
        %1576 = vmatpush1.msra.mxu0 0.0
        %1577 = vmatprep.subr.mxu0 0.0
        %1578 = vmatpush1.msra.mxu0 0.0
        %1579 = vmatprep.subr.mxu0 0.0
        %1580 = vmatpush1.msra.mxu0 0.0
        %1581 = vmatprep.subr.mxu0 0.0
        %1582 = vmatpush1.msra.mxu0 0.0
        %1583 = vmatprep.subr.mxu0 0.0
        %1584 = vmatpush1.msra.mxu0 0.0
        %1585 = vmatprep.subr.mxu0 0.0
        %1586 = vmatpush1.msra.mxu0 0.0
        %1587 = vmatprep.mubr.f32.mxu0 0.0
        %1588 = vmatmul.mubr.f32.gmra.mrb[0].mxu0 %v1521
        %v1589 = vpop.f32.mrb[0].mxu0
        %v1590 = vadd.f32 0.0, %v1589
        %v1591 = vpop.f32.mrb[0].mxu0
        %v1592 = vadd.f32 0.0, %v1591
        %1593 = vdwg.mxu0
        %1594 = vmatprep.subr.mxu0 %v728
        %1595 = vmatpush1.msra.mxu0 %v727
        %1596 = vmatprep.subr.mxu0 %v732
        %1597 = vmatpush1.msra.mxu0 %v731
        %1598 = vmatprep.subr.mxu0 %v736
        %1599 = vmatpush1.msra.mxu0 %v735
        %1600 = vmatprep.subr.mxu0 %v740
        %1601 = vmatpush1.msra.mxu0 %v739
        %1602 = vmatprep.subr.mxu0 %v744
        %1603 = vmatpush1.msra.mxu0 %v743
        %1604 = vmatprep.subr.mxu0 %v748
        %1605 = vmatpush1.msra.mxu0 %v747
        %1606 = vmatprep.subr.mxu0 %v752
        %1607 = vmatpush1.msra.mxu0 %v751
        %1608 = vmatprep.subr.mxu0 %v756
        %1609 = vmatpush1.msra.mxu0 %v755
        %1610 = vmatprep.subr.mxu0 %v760
        %1611 = vmatpush1.msra.mxu0 %v759
        %1612 = vmatprep.subr.mxu0 %v764
        %1613 = vmatpush1.msra.mxu0 %v763
        %1614 = vmatprep.subr.mxu0 %v768
        %1615 = vmatpush1.msra.mxu0 %v767
        %1616 = vmatprep.subr.mxu0 %v772
        %1617 = vmatpush1.msra.mxu0 %v771
        %1618 = vmatprep.subr.mxu0 %v776
        %1619 = vmatpush1.msra.mxu0 %v775
        %1620 = vmatprep.subr.mxu0 %v780
        %1621 = vmatpush1.msra.mxu0 %v779
        %1622 = vmatprep.subr.mxu0 %v784
        %1623 = vmatpush1.msra.mxu0 %v783
        %1624 = vmatprep.subr.mxu0 %v788
        %1625 = vmatpush1.msra.mxu0 %v787
        %1626 = vmatprep.subr.mxu0 0.0
        %1627 = vmatpush1.msra.mxu0 0.0
        %1628 = vmatprep.subr.mxu0 0.0
        %1629 = vmatpush1.msra.mxu0 0.0
        %1630 = vmatprep.subr.mxu0 0.0
        %1631 = vmatpush1.msra.mxu0 0.0
        %1632 = vmatprep.subr.mxu0 0.0
        %1633 = vmatpush1.msra.mxu0 0.0
        %1634 = vmatprep.subr.mxu0 0.0
        %1635 = vmatpush1.msra.mxu0 0.0
        %1636 = vmatprep.subr.mxu0 0.0
        %1637 = vmatpush1.msra.mxu0 0.0
        %1638 = vmatprep.subr.mxu0 0.0
        %1639 = vmatpush1.msra.mxu0 0.0
        %1640 = vmatprep.subr.mxu0 0.0
        %1641 = vmatpush1.msra.mxu0 0.0
        %1642 = vmatprep.subr.mxu0 0.0
        %1643 = vmatpush1.msra.mxu0 0.0
        %1644 = vmatprep.subr.mxu0 0.0
        %1645 = vmatpush1.msra.mxu0 0.0
        %1646 = vmatprep.subr.mxu0 0.0
        %1647 = vmatpush1.msra.mxu0 0.0
        %1648 = vmatprep.subr.mxu0 0.0
        %1649 = vmatpush1.msra.mxu0 0.0
        %1650 = vmatprep.subr.mxu0 0.0
        %1651 = vmatpush1.msra.mxu0 0.0
        %1652 = vmatprep.subr.mxu0 0.0
        %1653 = vmatpush1.msra.mxu0 0.0
        %1654 = vmatprep.subr.mxu0 0.0
        %1655 = vmatpush1.msra.mxu0 0.0
        %1656 = vmatprep.subr.mxu0 0.0
        %1657 = vmatpush1.msra.mxu0 0.0
        %1658 = vmatprep.mubr.f32.mxu0 0.0
        %1659 = vmatmul.mubr.f32.gmra.mrb[0].mxu0 %v1521
        %v1660 = vpop.f32.mrb[0].mxu0
        %v1661 = vadd.f32 0.0, %v1660
        %v1662 = vpop.f32.mrb[0].mxu0
        %v1663 = vadd.f32 0.0, %v1662
        %1664 = vdwg.mxu0
        %v1665 = vadd.f32 %v644, %v1590
        %v1666 = vadd.f32 %v646, %v1592
        %v1667 = vadd.f32 %v721, %v1661
        %v1668 = vadd.f32 %v723, %v1663
        %v1669 = vxor.u32 %v1665, 2147483648
        %v1670 = vmul.f32 %v1669, 1.442695
        %v1671 = vpow.pop %v1670
        %v1672 = vadd.f32 %v1671, 1.0
        %v1673 = vrcp.pop %v1672
        %v1674 = vmul.f32 1.0, %v1673
        %v1675 = vxor.u32 %v1666, 2147483648
        %v1676 = vmul.f32 %v1675, 1.442695
        %v1677 = vpow.pop %v1676
        %v1678 = vadd.f32 %v1677, 1.0
        %v1679 = vrcp.pop %v1678
        %v1680 = vmul.f32 1.0, %v1679
        %v1681 = vtanh.pop %v1667
        %v1682 = vxor.u32 %v1668, 2147483648
        %v1683 = vmul.f32 %v1682, 1.442695
        %v1684 = vpow.pop %v1683
        %v1685 = vadd.f32 %v1684, 1.0
        %v1686 = vrcp.pop %v1685
        %v1687 = vmul.f32 1.0, %v1686
        %v1689 = vrot.slane %v1517, 6
        %v1691 = vmul.f32 %v1680, %v1689
        %v1692 = vmul.f32 %v1674, %v1681
        %v1693 = vadd.f32 %v1691, %v1692
        %v1694 = vtanh.pop %v1693
        %v1695 = vmul.f32 %v1687, %v1694
        %1696 = vmatprep.subr.mxu0 %v726
        %1697 = vmatpush1.msra.mxu0 %v725
        %1698 = vmatprep.subr.mxu0 %v730
        %1699 = vmatpush1.msra.mxu0 %v729
        %1700 = vmatprep.subr.mxu0 %v734
        %1701 = vmatpush1.msra.mxu0 %v733
        %1702 = vmatprep.subr.mxu0 %v738
        %1703 = vmatpush1.msra.mxu0 %v737
        %1704 = vmatprep.subr.mxu0 %v742
        %1705 = vmatpush1.msra.mxu0 %v741
        %1706 = vmatprep.subr.mxu0 %v746
        %1707 = vmatpush1.msra.mxu0 %v745
        %1708 = vmatprep.subr.mxu0 %v750
        %1709 = vmatpush1.msra.mxu0 %v749
        %1710 = vmatprep.subr.mxu0 %v754
        %1711 = vmatpush1.msra.mxu0 %v753
        %1712 = vmatprep.subr.mxu0 %v758
        %1713 = vmatpush1.msra.mxu0 %v757
        %1714 = vmatprep.subr.mxu0 %v762
        %1715 = vmatpush1.msra.mxu0 %v761
        %1716 = vmatprep.subr.mxu0 %v766
        %1717 = vmatpush1.msra.mxu0 %v765
        %1718 = vmatprep.subr.mxu0 %v770
        %1719 = vmatpush1.msra.mxu0 %v769
        %1720 = vmatprep.subr.mxu0 %v774
        %1721 = vmatpush1.msra.mxu0 %v773
        %1722 = vmatprep.subr.mxu0 %v778
        %1723 = vmatpush1.msra.mxu0 %v777
        %1724 = vmatprep.subr.mxu0 %v782
        %1725 = vmatpush1.msra.mxu0 %v781
        %1726 = vmatprep.subr.mxu0 %v786
        %1727 = vmatpush1.msra.mxu0 %v785
        %1728 = vmatprep.subr.mxu0 0.0
        %1729 = vmatpush1.msra.mxu0 0.0
        %1730 = vmatprep.subr.mxu0 0.0
        %1731 = vmatpush1.msra.mxu0 0.0
        %1732 = vmatprep.subr.mxu0 0.0
        %1733 = vmatpush1.msra.mxu0 0.0
        %1734 = vmatprep.subr.mxu0 0.0
        %1735 = vmatpush1.msra.mxu0 0.0
        %1736 = vmatprep.subr.mxu0 0.0
        %1737 = vmatpush1.msra.mxu0 0.0
        %1738 = vmatprep.subr.mxu0 0.0
        %1739 = vmatpush1.msra.mxu0 0.0
        %1740 = vmatprep.subr.mxu0 0.0
        %1741 = vmatpush1.msra.mxu0 0.0
        %1742 = vmatprep.subr.mxu0 0.0
        %1743 = vmatpush1.msra.mxu0 0.0
        %1744 = vmatprep.subr.mxu0 0.0
        %1745 = vmatpush1.msra.mxu0 0.0
        %1746 = vmatprep.subr.mxu0 0.0
        %1747 = vmatpush1.msra.mxu0 0.0
        %1748 = vmatprep.subr.mxu0 0.0
        %1749 = vmatpush1.msra.mxu0 0.0
        %1750 = vmatprep.subr.mxu0 0.0
        %1751 = vmatpush1.msra.mxu0 0.0
        %1752 = vmatprep.subr.mxu0 0.0
        %1753 = vmatpush1.msra.mxu0 0.0
        %1754 = vmatprep.subr.mxu0 0.0
        %1755 = vmatpush1.msra.mxu0 0.0
        %1756 = vmatprep.subr.mxu0 0.0
        %1757 = vmatpush1.msra.mxu0 0.0
        %1758 = vmatprep.subr.mxu0 0.0
        %1759 = vmatpush1.msra.mxu0 0.0
        %1760 = vmatprep.mubr.f32.mxu0 0.0
        %1761 = vmatmul.mubr.f32.gmra.mrb[0].mxu0 %v1695
        %v1762 = vpop.f32.mrb[0].mxu0
        %v1763 = vadd.f32 0.0, %v1762
        %v1764 = vpop.f32.mrb[0].mxu0
        %v1765 = vadd.f32 0.0, %v1764
        %1766 = vdwg.mxu0
        %1767 = vmatprep.subr.mxu0 %v728
        %1768 = vmatpush1.msra.mxu0 %v727
        %1769 = vmatprep.subr.mxu0 %v732
        %1770 = vmatpush1.msra.mxu0 %v731
        %1771 = vmatprep.subr.mxu0 %v736
        %1772 = vmatpush1.msra.mxu0 %v735
        %1773 = vmatprep.subr.mxu0 %v740
        %1774 = vmatpush1.msra.mxu0 %v739
        %1775 = vmatprep.subr.mxu0 %v744
        %1776 = vmatpush1.msra.mxu0 %v743
        %1777 = vmatprep.subr.mxu0 %v748
        %1778 = vmatpush1.msra.mxu0 %v747
        %1779 = vmatprep.subr.mxu0 %v752
        %1780 = vmatpush1.msra.mxu0 %v751
        %1781 = vmatprep.subr.mxu0 %v756
        %1782 = vmatpush1.msra.mxu0 %v755
        %1783 = vmatprep.subr.mxu0 %v760
        %1784 = vmatpush1.msra.mxu0 %v759
        %1785 = vmatprep.subr.mxu0 %v764
        %1786 = vmatpush1.msra.mxu0 %v763
        %1787 = vmatprep.subr.mxu0 %v768
        %1788 = vmatpush1.msra.mxu0 %v767
        %1789 = vmatprep.subr.mxu0 %v772
        %1790 = vmatpush1.msra.mxu0 %v771
        %1791 = vmatprep.subr.mxu0 %v776
        %1792 = vmatpush1.msra.mxu0 %v775
        %1793 = vmatprep.subr.mxu0 %v780
        %1794 = vmatpush1.msra.mxu0 %v779
        %1795 = vmatprep.subr.mxu0 %v784
        %1796 = vmatpush1.msra.mxu0 %v783
        %1797 = vmatprep.subr.mxu0 %v788
        %1798 = vmatpush1.msra.mxu0 %v787
        %1799 = vmatprep.subr.mxu0 0.0
        %1800 = vmatpush1.msra.mxu0 0.0
        %1801 = vmatprep.subr.mxu0 0.0
        %1802 = vmatpush1.msra.mxu0 0.0
        %1803 = vmatprep.subr.mxu0 0.0
        %1804 = vmatpush1.msra.mxu0 0.0
        %1805 = vmatprep.subr.mxu0 0.0
        %1806 = vmatpush1.msra.mxu0 0.0
        %1807 = vmatprep.subr.mxu0 0.0
        %1808 = vmatpush1.msra.mxu0 0.0
        %1809 = vmatprep.subr.mxu0 0.0
        %1810 = vmatpush1.msra.mxu0 0.0
        %1811 = vmatprep.subr.mxu0 0.0
        %1812 = vmatpush1.msra.mxu0 0.0
        %1813 = vmatprep.subr.mxu0 0.0
        %1814 = vmatpush1.msra.mxu0 0.0
        %1815 = vmatprep.subr.mxu0 0.0
        %1816 = vmatpush1.msra.mxu0 0.0
        %1817 = vmatprep.subr.mxu0 0.0
        %1818 = vmatpush1.msra.mxu0 0.0
        %1819 = vmatprep.subr.mxu0 0.0
        %1820 = vmatpush1.msra.mxu0 0.0
        %1821 = vmatprep.subr.mxu0 0.0
        %1822 = vmatpush1.msra.mxu0 0.0
        %1823 = vmatprep.subr.mxu0 0.0
        %1824 = vmatpush1.msra.mxu0 0.0
        %1825 = vmatprep.subr.mxu0 0.0
        %1826 = vmatpush1.msra.mxu0 0.0
        %1827 = vmatprep.subr.mxu0 0.0
        %1828 = vmatpush1.msra.mxu0 0.0
        %1829 = vmatprep.subr.mxu0 0.0
        %1830 = vmatpush1.msra.mxu0 0.0
        %1831 = vmatprep.mubr.f32.mxu0 0.0
        %1832 = vmatmul.mubr.f32.gmra.mrb[0].mxu0 %v1695
        %v1833 = vpop.f32.mrb[0].mxu0
        %v1834 = vadd.f32 0.0, %v1833
        %v1835 = vpop.f32.mrb[0].mxu0
        %v1836 = vadd.f32 0.0, %v1835
        %1837 = vdwg.mxu0
        %v1842 = vrot.slane %v1763, 6
        %v1843 = vrot.slane %v1765, 6
        %v1844 = vrot.slane %v1834, 6
        %v1845 = vrot.slane %v1836, 6
        %v1850 = vadd.f32 %v644, %v1842
        %v1851 = vadd.f32 %v646, %v1843
        %v1852 = vadd.f32 %v721, %v1844
        %v1853 = vadd.f32 %v723, %v1845
        %v1854 = vxor.u32 %v1850, 2147483648
        %v1855 = vmul.f32 %v1854, 1.442695
        %v1856 = vpow.pop %v1855
        %v1857 = vadd.f32 %v1856, 1.0
        %v1858 = vrcp.pop %v1857
        %v1859 = vmul.f32 1.0, %v1858
        %v1860 = vxor.u32 %v1851, 2147483648
        %v1861 = vmul.f32 %v1860, 1.442695
        %v1862 = vpow.pop %v1861
        %v1863 = vadd.f32 %v1862, 1.0
        %v1864 = vrcp.pop %v1863
        %v1865 = vmul.f32 1.0, %v1864
        %v1866 = vtanh.pop %v1852
        %v1867 = vxor.u32 %v1853, 2147483648
        %v1868 = vmul.f32 %v1867, 1.442695
        %v1869 = vpow.pop %v1868
        %v1870 = vadd.f32 %v1869, 1.0
        %v1871 = vrcp.pop %v1870
        %v1872 = vmul.f32 1.0, %v1871
        %v1874 = vrot.slane %v1693, 6
        %v1876 = vmul.f32 %v1865, %v1874
        %v1877 = vmul.f32 %v1859, %v1866
        %v1878 = vadd.f32 %v1876, %v1877
        %v1879 = vtanh.pop %v1878
        %v1880 = vmul.f32 %v1872, %v1879
        %v1882 = vrot.slane %v1880, 2
        %1884 = vmatprep.subr.mxu0 %v726
        %1885 = vmatpush1.msra.mxu0 %v725
        %1886 = vmatprep.subr.mxu0 %v730
        %1887 = vmatpush1.msra.mxu0 %v729
        %1888 = vmatprep.subr.mxu0 %v734
        %1889 = vmatpush1.msra.mxu0 %v733
        %1890 = vmatprep.subr.mxu0 %v738
        %1891 = vmatpush1.msra.mxu0 %v737
        %1892 = vmatprep.subr.mxu0 %v742
        %1893 = vmatpush1.msra.mxu0 %v741
        %1894 = vmatprep.subr.mxu0 %v746
        %1895 = vmatpush1.msra.mxu0 %v745
        %1896 = vmatprep.subr.mxu0 %v750
        %1897 = vmatpush1.msra.mxu0 %v749
        %1898 = vmatprep.subr.mxu0 %v754
        %1899 = vmatpush1.msra.mxu0 %v753
        %1900 = vmatprep.subr.mxu0 %v758
        %1901 = vmatpush1.msra.mxu0 %v757
        %1902 = vmatprep.subr.mxu0 %v762
        %1903 = vmatpush1.msra.mxu0 %v761
        %1904 = vmatprep.subr.mxu0 %v766
        %1905 = vmatpush1.msra.mxu0 %v765
        %1906 = vmatprep.subr.mxu0 %v770
        %1907 = vmatpush1.msra.mxu0 %v769
        %1908 = vmatprep.subr.mxu0 %v774
        %1909 = vmatpush1.msra.mxu0 %v773
        %1910 = vmatprep.subr.mxu0 %v778
        %1911 = vmatpush1.msra.mxu0 %v777
        %1912 = vmatprep.subr.mxu0 %v782
        %1913 = vmatpush1.msra.mxu0 %v781
        %1914 = vmatprep.subr.mxu0 %v786
        %1915 = vmatpush1.msra.mxu0 %v785
        %1916 = vmatprep.subr.mxu0 0.0
        %1917 = vmatpush1.msra.mxu0 0.0
        %1918 = vmatprep.subr.mxu0 0.0
        %1919 = vmatpush1.msra.mxu0 0.0
        %1920 = vmatprep.subr.mxu0 0.0
        %1921 = vmatpush1.msra.mxu0 0.0
        %1922 = vmatprep.subr.mxu0 0.0
        %1923 = vmatpush1.msra.mxu0 0.0
        %1924 = vmatprep.subr.mxu0 0.0
        %1925 = vmatpush1.msra.mxu0 0.0
        %1926 = vmatprep.subr.mxu0 0.0
        %1927 = vmatpush1.msra.mxu0 0.0
        %1928 = vmatprep.subr.mxu0 0.0
        %1929 = vmatpush1.msra.mxu0 0.0
        %1930 = vmatprep.subr.mxu0 0.0
        %1931 = vmatpush1.msra.mxu0 0.0
        %1932 = vmatprep.subr.mxu0 0.0
        %1933 = vmatpush1.msra.mxu0 0.0
        %1934 = vmatprep.subr.mxu0 0.0
        %1935 = vmatpush1.msra.mxu0 0.0
        %1936 = vmatprep.subr.mxu0 0.0
        %1937 = vmatpush1.msra.mxu0 0.0
        %1938 = vmatprep.subr.mxu0 0.0
        %1939 = vmatpush1.msra.mxu0 0.0
        %1940 = vmatprep.subr.mxu0 0.0
        %1941 = vmatpush1.msra.mxu0 0.0
        %1942 = vmatprep.subr.mxu0 0.0
        %1943 = vmatpush1.msra.mxu0 0.0
        %1944 = vmatprep.subr.mxu0 0.0
        %1945 = vmatpush1.msra.mxu0 0.0
        %1946 = vmatprep.subr.mxu0 0.0
        %1947 = vmatpush1.msra.mxu0 0.0
        %1948 = vmatprep.mubr.f32.mxu0 0.0
        %1949 = vmatmul.mubr.f32.gmra.mrb[0].mxu0 %v1882
        %v1950 = vpop.f32.mrb[0].mxu0
        %v1951 = vadd.f32 0.0, %v1950
        %v1952 = vpop.f32.mrb[0].mxu0
        %v1953 = vadd.f32 0.0, %v1952
        %1954 = vdwg.mxu0
        %1955 = vmatprep.subr.mxu0 %v728
        %1956 = vmatpush1.msra.mxu0 %v727
        %1957 = vmatprep.subr.mxu0 %v732
        %1958 = vmatpush1.msra.mxu0 %v731
        %1959 = vmatprep.subr.mxu0 %v736
        %1960 = vmatpush1.msra.mxu0 %v735
        %1961 = vmatprep.subr.mxu0 %v740
        %1962 = vmatpush1.msra.mxu0 %v739
        %1963 = vmatprep.subr.mxu0 %v744
        %1964 = vmatpush1.msra.mxu0 %v743
        %1965 = vmatprep.subr.mxu0 %v748
        %1966 = vmatpush1.msra.mxu0 %v747
        %1967 = vmatprep.subr.mxu0 %v752
        %1968 = vmatpush1.msra.mxu0 %v751
        %1969 = vmatprep.subr.mxu0 %v756
        %1970 = vmatpush1.msra.mxu0 %v755
        %1971 = vmatprep.subr.mxu0 %v760
        %1972 = vmatpush1.msra.mxu0 %v759
        %1973 = vmatprep.subr.mxu0 %v764
        %1974 = vmatpush1.msra.mxu0 %v763
        %1975 = vmatprep.subr.mxu0 %v768
        %1976 = vmatpush1.msra.mxu0 %v767
        %1977 = vmatprep.subr.mxu0 %v772
        %1978 = vmatpush1.msra.mxu0 %v771
        %1979 = vmatprep.subr.mxu0 %v776
        %1980 = vmatpush1.msra.mxu0 %v775
        %1981 = vmatprep.subr.mxu0 %v780
        %1982 = vmatpush1.msra.mxu0 %v779
        %1983 = vmatprep.subr.mxu0 %v784
        %1984 = vmatpush1.msra.mxu0 %v783
        %1985 = vmatprep.subr.mxu0 %v788
        %1986 = vmatpush1.msra.mxu0 %v787
        %1987 = vmatprep.subr.mxu0 0.0
        %1988 = vmatpush1.msra.mxu0 0.0
        %1989 = vmatprep.subr.mxu0 0.0
        %1990 = vmatpush1.msra.mxu0 0.0
        %1991 = vmatprep.subr.mxu0 0.0
        %1992 = vmatpush1.msra.mxu0 0.0
        %1993 = vmatprep.subr.mxu0 0.0
        %1994 = vmatpush1.msra.mxu0 0.0
        %1995 = vmatprep.subr.mxu0 0.0
        %1996 = vmatpush1.msra.mxu0 0.0
        %1997 = vmatprep.subr.mxu0 0.0
        %1998 = vmatpush1.msra.mxu0 0.0
        %1999 = vmatprep.subr.mxu0 0.0
        %2000 = vmatpush1.msra.mxu0 0.0
        %2001 = vmatprep.subr.mxu0 0.0
        %2002 = vmatpush1.msra.mxu0 0.0
        %2003 = vmatprep.subr.mxu0 0.0
        %2004 = vmatpush1.msra.mxu0 0.0
        %2005 = vmatprep.subr.mxu0 0.0
        %2006 = vmatpush1.msra.mxu0 0.0
        %2007 = vmatprep.subr.mxu0 0.0
        %2008 = vmatpush1.msra.mxu0 0.0
        %2009 = vmatprep.subr.mxu0 0.0
        %2010 = vmatpush1.msra.mxu0 0.0
        %2011 = vmatprep.subr.mxu0 0.0
        %2012 = vmatpush1.msra.mxu0 0.0
        %2013 = vmatprep.subr.mxu0 0.0
        %2014 = vmatpush1.msra.mxu0 0.0
        %2015 = vmatprep.subr.mxu0 0.0
        %2016 = vmatpush1.msra.mxu0 0.0
        %2017 = vmatprep.subr.mxu0 0.0
        %2018 = vmatpush1.msra.mxu0 0.0
        %2019 = vmatprep.mubr.f32.mxu0 0.0
        %2020 = vmatmul.mubr.f32.gmra.mrb[0].mxu0 %v1882
        %v2021 = vpop.f32.mrb[0].mxu0
        %v2022 = vadd.f32 0.0, %v2021
        %v2023 = vpop.f32.mrb[0].mxu0
        %v2024 = vadd.f32 0.0, %v2023
        %2025 = vdwg.mxu0
        %v2030 = vrot.slane %v1951, 4
        %v2031 = vrot.slane %v1953, 4
        %v2032 = vrot.slane %v2022, 4
        %v2033 = vrot.slane %v2024, 4
        %v2038 = vadd.f32 %v644, %v2030
        %v2039 = vadd.f32 %v646, %v2031
        %v2040 = vadd.f32 %v721, %v2032
        %v2041 = vadd.f32 %v723, %v2033
        %v2042 = vxor.u32 %v2038, 2147483648
        %v2043 = vmul.f32 %v2042, 1.442695
        %v2044 = vpow.pop %v2043
        %v2045 = vadd.f32 %v2044, 1.0
        %v2046 = vrcp.pop %v2045
        %v2047 = vmul.f32 1.0, %v2046
        %v2048 = vxor.u32 %v2039, 2147483648
        %v2049 = vmul.f32 %v2048, 1.442695
        %v2050 = vpow.pop %v2049
        %v2051 = vadd.f32 %v2050, 1.0
        %v2052 = vrcp.pop %v2051
        %v2053 = vmul.f32 1.0, %v2052
        %v2054 = vtanh.pop %v2040
        %v2055 = vxor.u32 %v2041, 2147483648
        %v2056 = vmul.f32 %v2055, 1.442695
        %v2057 = vpow.pop %v2056
        %v2058 = vadd.f32 %v2057, 1.0
        %v2059 = vrcp.pop %v2058
        %v2060 = vmul.f32 1.0, %v2059
        %v2062 = vrot.slane %v1878, 6
        %v2064 = vmul.f32 %v2053, %v2062
        %v2065 = vmul.f32 %v2047, %v2054
        %v2066 = vadd.f32 %v2064, %v2065
        %v2067 = vtanh.pop %v2066
        %v2068 = vmul.f32 %v2060, %v2067
        %v2070 = vrot.slane %v2068, 4
        %2072 = vmatprep.subr.mxu0 %v726
        %2073 = vmatpush1.msra.mxu0 %v725
        %2074 = vmatprep.subr.mxu0 %v730
        %2075 = vmatpush1.msra.mxu0 %v729
        %2076 = vmatprep.subr.mxu0 %v734
        %2077 = vmatpush1.msra.mxu0 %v733
        %2078 = vmatprep.subr.mxu0 %v738
        %2079 = vmatpush1.msra.mxu0 %v737
        %2080 = vmatprep.subr.mxu0 %v742
        %2081 = vmatpush1.msra.mxu0 %v741
        %2082 = vmatprep.subr.mxu0 %v746
        %2083 = vmatpush1.msra.mxu0 %v745
        %2084 = vmatprep.subr.mxu0 %v750
        %2085 = vmatpush1.msra.mxu0 %v749
        %2086 = vmatprep.subr.mxu0 %v754
        %2087 = vmatpush1.msra.mxu0 %v753
        %2088 = vmatprep.subr.mxu0 %v758
        %2089 = vmatpush1.msra.mxu0 %v757
        %2090 = vmatprep.subr.mxu0 %v762
        %2091 = vmatpush1.msra.mxu0 %v761
        %2092 = vmatprep.subr.mxu0 %v766
        %2093 = vmatpush1.msra.mxu0 %v765
        %2094 = vmatprep.subr.mxu0 %v770
        %2095 = vmatpush1.msra.mxu0 %v769
        %2096 = vmatprep.subr.mxu0 %v774
        %2097 = vmatpush1.msra.mxu0 %v773
        %2098 = vmatprep.subr.mxu0 %v778
        %2099 = vmatpush1.msra.mxu0 %v777
        %2100 = vmatprep.subr.mxu0 %v782
        %2101 = vmatpush1.msra.mxu0 %v781
        %2102 = vmatprep.subr.mxu0 %v786
        %2103 = vmatpush1.msra.mxu0 %v785
        %2104 = vmatprep.subr.mxu0 0.0
        %2105 = vmatpush1.msra.mxu0 0.0
        %2106 = vmatprep.subr.mxu0 0.0
        %2107 = vmatpush1.msra.mxu0 0.0
        %2108 = vmatprep.subr.mxu0 0.0
        %2109 = vmatpush1.msra.mxu0 0.0
        %2110 = vmatprep.subr.mxu0 0.0
        %2111 = vmatpush1.msra.mxu0 0.0
        %2112 = vmatprep.subr.mxu0 0.0
        %2113 = vmatpush1.msra.mxu0 0.0
        %2114 = vmatprep.subr.mxu0 0.0
        %2115 = vmatpush1.msra.mxu0 0.0
        %2116 = vmatprep.subr.mxu0 0.0
        %2117 = vmatpush1.msra.mxu0 0.0
        %2118 = vmatprep.subr.mxu0 0.0
        %2119 = vmatpush1.msra.mxu0 0.0
        %2120 = vmatprep.subr.mxu0 0.0
        %2121 = vmatpush1.msra.mxu0 0.0
        %2122 = vmatprep.subr.mxu0 0.0
        %2123 = vmatpush1.msra.mxu0 0.0
        %2124 = vmatprep.subr.mxu0 0.0
        %2125 = vmatpush1.msra.mxu0 0.0
        %2126 = vmatprep.subr.mxu0 0.0
        %2127 = vmatpush1.msra.mxu0 0.0
        %2128 = vmatprep.subr.mxu0 0.0
        %2129 = vmatpush1.msra.mxu0 0.0
        %2130 = vmatprep.subr.mxu0 0.0
        %2131 = vmatpush1.msra.mxu0 0.0
        %2132 = vmatprep.subr.mxu0 0.0
        %2133 = vmatpush1.msra.mxu0 0.0
        %2134 = vmatprep.subr.mxu0 0.0
        %2135 = vmatpush1.msra.mxu0 0.0
        %2136 = vmatprep.mubr.f32.mxu0 0.0
        %2137 = vmatmul.mubr.f32.gmra.mrb[0].mxu0 %v2070
        %v2138 = vpop.f32.mrb[0].mxu0
        %v2139 = vadd.f32 0.0, %v2138
        %v2140 = vpop.f32.mrb[0].mxu0
        %v2141 = vadd.f32 0.0, %v2140
        %2142 = vdwg.mxu0
        %2143 = vmatprep.subr.mxu0 %v728
        %2144 = vmatpush1.msra.mxu0 %v727
        %2145 = vmatprep.subr.mxu0 %v732
        %2146 = vmatpush1.msra.mxu0 %v731
        %2147 = vmatprep.subr.mxu0 %v736
        %2148 = vmatpush1.msra.mxu0 %v735
        %2149 = vmatprep.subr.mxu0 %v740
        %2150 = vmatpush1.msra.mxu0 %v739
        %2151 = vmatprep.subr.mxu0 %v744
        %2152 = vmatpush1.msra.mxu0 %v743
        %2153 = vmatprep.subr.mxu0 %v748
        %2154 = vmatpush1.msra.mxu0 %v747
        %2155 = vmatprep.subr.mxu0 %v752
        %2156 = vmatpush1.msra.mxu0 %v751
        %2157 = vmatprep.subr.mxu0 %v756
        %2158 = vmatpush1.msra.mxu0 %v755
        %2159 = vmatprep.subr.mxu0 %v760
        %2160 = vmatpush1.msra.mxu0 %v759
        %2161 = vmatprep.subr.mxu0 %v764
        %2162 = vmatpush1.msra.mxu0 %v763
        %2163 = vmatprep.subr.mxu0 %v768
        %2164 = vmatpush1.msra.mxu0 %v767
        %2165 = vmatprep.subr.mxu0 %v772
        %2166 = vmatpush1.msra.mxu0 %v771
        %2167 = vmatprep.subr.mxu0 %v776
        %2168 = vmatpush1.msra.mxu0 %v775
        %2169 = vmatprep.subr.mxu0 %v780
        %2170 = vmatpush1.msra.mxu0 %v779
        %2171 = vmatprep.subr.mxu0 %v784
        %2172 = vmatpush1.msra.mxu0 %v783
        %2173 = vmatprep.subr.mxu0 %v788
        %2174 = vmatpush1.msra.mxu0 %v787
        %2175 = vmatprep.subr.mxu0 0.0
        %2176 = vmatpush1.msra.mxu0 0.0
        %2177 = vmatprep.subr.mxu0 0.0
        %2178 = vmatpush1.msra.mxu0 0.0
        %2179 = vmatprep.subr.mxu0 0.0
        %2180 = vmatpush1.msra.mxu0 0.0
        %2181 = vmatprep.subr.mxu0 0.0
        %2182 = vmatpush1.msra.mxu0 0.0
        %2183 = vmatprep.subr.mxu0 0.0
        %2184 = vmatpush1.msra.mxu0 0.0
        %2185 = vmatprep.subr.mxu0 0.0
        %2186 = vmatpush1.msra.mxu0 0.0
        %2187 = vmatprep.subr.mxu0 0.0
        %2188 = vmatpush1.msra.mxu0 0.0
        %2189 = vmatprep.subr.mxu0 0.0
        %2190 = vmatpush1.msra.mxu0 0.0
        %2191 = vmatprep.subr.mxu0 0.0
        %2192 = vmatpush1.msra.mxu0 0.0
        %2193 = vmatprep.subr.mxu0 0.0
        %2194 = vmatpush1.msra.mxu0 0.0
        %2195 = vmatprep.subr.mxu0 0.0
        %2196 = vmatpush1.msra.mxu0 0.0
        %2197 = vmatprep.subr.mxu0 0.0
        %2198 = vmatpush1.msra.mxu0 0.0
        %2199 = vmatprep.subr.mxu0 0.0
        %2200 = vmatpush1.msra.mxu0 0.0
        %2201 = vmatprep.subr.mxu0 0.0
        %2202 = vmatpush1.msra.mxu0 0.0
        %2203 = vmatprep.subr.mxu0 0.0
        %2204 = vmatpush1.msra.mxu0 0.0
        %2205 = vmatprep.subr.mxu0 0.0
        %2206 = vmatpush1.msra.mxu0 0.0
        %2207 = vmatprep.mubr.f32.mxu0 0.0
        %2208 = vmatmul.mubr.f32.gmra.mrb[0].mxu0 %v2070
        %v2209 = vpop.f32.mrb[0].mxu0
        %v2210 = vadd.f32 0.0, %v2209
        %v2211 = vpop.f32.mrb[0].mxu0
        %v2212 = vadd.f32 0.0, %v2211
        %2213 = vdwg.mxu0
        %v2218 = vrot.slane %v2139, 2
        %v2219 = vrot.slane %v2141, 2
        %v2220 = vrot.slane %v2210, 2
        %v2221 = vrot.slane %v2212, 2
        %v2226 = vadd.f32 %v644, %v2218
        %v2227 = vadd.f32 %v646, %v2219
        %v2228 = vadd.f32 %v721, %v2220
        %v2229 = vadd.f32 %v723, %v2221
        %v2230 = vxor.u32 %v2226, 2147483648
        %v2231 = vmul.f32 %v2230, 1.442695
        %v2232 = vpow.pop %v2231
        %v2233 = vadd.f32 %v2232, 1.0
        %v2234 = vrcp.pop %v2233
        %v2235 = vmul.f32 1.0, %v2234
        %v2236 = vxor.u32 %v2227, 2147483648
        %v2237 = vmul.f32 %v2236, 1.442695
        %v2238 = vpow.pop %v2237
        %v2239 = vadd.f32 %v2238, 1.0
        %v2240 = vrcp.pop %v2239
        %v2241 = vmul.f32 1.0, %v2240
        %v2242 = vtanh.pop %v2228
        %v2243 = vxor.u32 %v2229, 2147483648
        %v2244 = vmul.f32 %v2243, 1.442695
        %v2245 = vpow.pop %v2244
        %v2246 = vadd.f32 %v2245, 1.0
        %v2247 = vrcp.pop %v2246
        %v2248 = vmul.f32 1.0, %v2247
        %v2250 = vrot.slane %v2066, 6
        %v2252 = vmul.f32 %v2241, %v2250
        %v2253 = vmul.f32 %v2235, %v2242
        %v2254 = vadd.f32 %v2252, %v2253
        %v2255 = vtanh.pop %v2254
        %v2256 = vmul.f32 %v2248, %v2255
        %vm2257 = vcmask 1041408
        %v2258 = vsel %vm2257, %v958, %v1143
        %vm2259 = vcmask 1043456
        %v2260 = vsel %vm2259, %v2258, %v1331
        %vm2261 = vcmask 1045504
        %v2262 = vsel %vm2261, %v2260, %v1519
        %v2263 = vsel %vm2257, %v1695, %v1880
        %v2264 = vsel %vm2259, %v2263, %v2068
        %v2265 = vsel %vm2261, %v2264, %v2256
        %2266 = vst [vmem:[#allocation13] sm:$0xff] %v2262
        %2267 = vst [vmem:[#allocation13 + $0x8] sm:$0xff] %v2265
        %2268 = vst [vmem:[%s474 - $0x6] sm:$0xc0] %v2256
        %2269 = vst [vmem:[%s482 - $0x6] sm:$0xc0] %v2254
        // Predicated region
        $region69: #{fused_lstm_forward.1} parent=43 // pred_check
          %p2270 = pneg %p209
        $region70: #{fused_lstm_forward.1} parent=43 // pred_check_branch
          %2272 = sbr.rel (%p2270) target = $region72
        $region71: #{fused_lstm_forward.1} parent=43 // pred_region
          %s2274 = ssub.s32 256, 256
          %2275 = vsyncadd [#allocation4], %s2274
          %s2276 = sshll.u32 [#allocation13], 4
          %s2277 = int_to_ptr.vmem [resolvable:$true] %s2276
          %2282 = dma.vmem_to_hbm [thread:$0]  %s2277, 256, %s6, [#allocation4], 128, 128, 8
        $region72: #{fused_lstm_forward.1} parent=43 // pred_fallthru
          _
        // Predicated region
        $region73: #{fused_lstm_forward.1} parent=43 // pred_check
          %p2283 = pneg %p230
        $region74: #{fused_lstm_forward.1} parent=43 // pred_check_branch
          %2285 = sbr.rel (%p2283) target = $region76
        $region75: #{fused_lstm_forward.1} parent=43 // pred_region
          %s2287 = ssub.s32 128, 128
          %2288 = vsyncadd [#allocation15], %s2287
          %s2289 = sshll.u32 [#allocation14], 4
          %s2290 = int_to_ptr.vmem [resolvable:$true] %s2289
          %2295 = dma.vmem_to_hbm [thread:$0]  %s2290, 128, %s7, [#allocation15], 32, 32, 2
        $region76: #{fused_lstm_forward.1} parent=43 // pred_fallthru
          _
        // Predicated region
        $region77: #{fused_lstm_forward.1} parent=43 // pred_check
          %p2296 = pneg %p251
        $region78: #{fused_lstm_forward.1} parent=43 // pred_check_branch
          %2298 = sbr.rel (%p2296) target = $region80
        $region79: #{fused_lstm_forward.1} parent=43 // pred_region
          %s2300 = ssub.s32 128, 128
          %2301 = vsyncadd [#allocation15], %s2300
          %s2302 = sshll.u32 [#allocation16], 4
          %s2303 = int_to_ptr.vmem [resolvable:$true] %s2302
          %2308 = dma.vmem_to_hbm [thread:$0]  %s2303, 128, %s8, [#allocation15], 32, 32, 2
        $region80: #{fused_lstm_forward.1} parent=43 // pred_fallthru
          _
        // Predicated region
        $region81: #{fused_lstm_forward.1} parent=43 // pred_check
          %p2309 = pneg %p209
        $region82: #{fused_lstm_forward.1} parent=43 // pred_check_branch
          %2311 = sbr.rel (%p2309) target = $region84
        $region83: #{fused_lstm_forward.1} parent=43 // pred_region
          %2312 = dma.done [#allocation4], 256
        $region84: #{fused_lstm_forward.1} parent=43 // pred_fallthru
          _
        // Predicated region
        $region85: #{fused_lstm_forward.1} parent=43 // pred_check
          %p2313 = pneg %p230
        $region86: #{fused_lstm_forward.1} parent=43 // pred_check_branch
          %2315 = sbr.rel (%p2313) target = $region88
        $region87: #{fused_lstm_forward.1} parent=43 // pred_region
          %2316 = dma.done [#allocation15], 128
        $region88: #{fused_lstm_forward.1} parent=43 // pred_fallthru
          _
        // Predicated region
        $region89: #{fused_lstm_forward.1} parent=43 // pred_check
          %p2317 = pneg %p251
        $region90: #{fused_lstm_forward.1} parent=43 // pred_check_branch
          %2319 = sbr.rel (%p2317) target = $region92
        $region91: #{fused_lstm_forward.1} parent=43 // pred_region
          %2320 = dma.done [#allocation15], 128
        $region92: #{fused_lstm_forward.1} parent=43 // pred_fallthru
          _
      $region44: #{fused_lstm_forward.1} parent=5 // pred_fallthru
        _
      %p2321 = scmp.le.s32.totalorder 2, %s25
      // Predicated region
      $region93: #{fused_lstm_forward.1} parent=5 // pred_check
        %p2322 = pneg %p2321
      $region94: #{fused_lstm_forward.1} parent=5 // pred_check_branch
        %2324 = sbr.rel (%p2322) target = $region96
      $region95: #{fused_lstm_forward.1} parent=5 // pred_region
        %s2325 = ssub.s32 %s25, 2
      $region96: #{fused_lstm_forward.1} parent=5 // pred_fallthru
        _
    $region6: #{fused_lstm_forward.1} parent=1 // loop_footer
      %s29 = sadd.s32 1, %s25
    $region7: #{fused_lstm_forward.1} parent=1 // loop_footer_branch
      %24 = sbr.rel target = $region3
    $region8: #{fused_lstm_forward.1} parent=1 // loop_exit
      _
    %2326 = vsyncpa [#allocation3], 1
    %s2327 = scalar_lea.sflag [#allocation3], 1
    %2328 = vsyncpa %s2327, 1
    %2329 = vsyncpa [#allocation6], 1
    %s2330 = scalar_lea.sflag [#allocation6], 1
    %2331 = vsyncpa %s2330, 1
    %2332 = vsyncpa [#allocation9], 1
    %s2333 = scalar_lea.sflag [#allocation9], 1
    %2334 = vsyncpa %s2333, 1
    %2335 = vsyncpa [#allocation12], 1
    %2336 = vsyncpa [#allocation4], 1
    %s2337 = scalar_lea.sflag [#allocation4], 1
    %2338 = vsyncpa %s2337, 1
    %2339 = vsyncpa [#allocation15], 1

</llo_original>
